<compile_context>
chip_gen: v6e
topology: v6e:2x2x1
jax: 0.10.0
libtpu: 0.0.40
codegen_flags: <defaults>
</compile_context>

<pallas_src>
import math

import jax
import jax.numpy as jnp
from jax.experimental import pallas as pl
from jax.experimental.pallas import tpu as pltpu

# ----------------------------- configuration -------------------------------
B = 2                      # batch
DIM = 16                   # channels
H = W = 8                  # spatial (multiple of window -> reflect-pad path is a no-op)
WINDOW = 4                 # window_size
NUM_HEADS = 2
HEAD_DIM = DIM // NUM_HEADS
N = WINDOW * WINDOW        # tokens per window
MLP_RATIO = 4.0
HIDDEN = int(DIM * MLP_RATIO)
NETWORK_DEPTH = 8
EPS = 1e-5
SCALE = HEAD_DIM ** (-0.5)
NW = (H // WINDOW) * (W // WINDOW)
BWIN = B * NW
HW = H * W
LANES = B * HW             # 128: batch folded into the lane dimension
NEG_BIAS = -1e30           # mask value for cross-window / cross-sample entries

USE_BF16 = True                                       # bf16 MXU inputs, f32 accumulate
MM_DTYPE = jnp.bfloat16 if USE_BF16 else jnp.float32
TOL = 1e-2 if USE_BF16 else 2e-3                      # bf16 inputs add ~2-3e-3 abs err

# ---- packed per-channel-vector operand layout (all (n,1) f32, static slices) ----
_VEC_LAYOUT = (('rln_w', DIM), ('rln_b', DIM),
               ('m1w', DIM), ('m1b', DIM), ('m2w', DIM), ('m2b', DIM),
               ('b_qkv', 3 * DIM),            # b_q (pre-scaled), b_k, b_v contiguous
               ('b_proj', DIM), ('b_mlp1', HIDDEN), ('b_mlp2', DIM))
_VEC_IDX = {}
_off = 0
for _name, _n in _VEC_LAYOUT:
    _VEC_IDX[_name] = (_off, _off + _n)
    _off += _n
VEC_LEN = _off                                        # 240

# ---- packed weight-matrix operand layout: rows of a (128, 16) array ----
W_QKV0, W_QKV1 = 0, 3 * DIM                           # Q(scaled), K, V : rows  0..48
W_PROJ0, W_PROJ1 = 3 * DIM, 4 * DIM                   # proj            : rows 48..64
W_MLP10, W_MLP11 = 4 * DIM, 4 * DIM + HIDDEN          # mlp fc1         : rows 64..128
W_ROWS = 4 * DIM + HIDDEN

# ---- advisory cost estimate (matmul flops, softmax exps, operand bytes) ----
_ITEM = jnp.dtype(MM_DTYPE).itemsize
_FLOPS = (2 * 3 * DIM * DIM * LANES                       # QKV
          + NUM_HEADS * 2 * 2 * HEAD_DIM * LANES * LANES  # scores + PV
          + 2 * DIM * DIM * LANES                         # proj
          + 2 * HIDDEN * DIM * LANES                      # mlp fc1
          + 2 * DIM * HIDDEN * LANES)                     # mlp fc2
_TRANSCENDENTALS = NUM_HEADS * LANES * LANES
_BYTES = (2 * DIM * LANES * 4 + W_ROWS * DIM * _ITEM + DIM * HIDDEN * _ITEM
          + VEC_LEN * 4 + NUM_HEADS * LANES * LANES * _ITEM)
_COST = pl.CostEstimate(flops=_FLOPS, transcendentals=_TRANSCENDENTALS,
                        bytes_accessed=_BYTES)


# ------------------------------- fused kernel -------------------------------
def fused_block_kernel(x_ref, w_ref, wm2_ref, vec_ref, bias_ref, o_ref, attn_sc):
    """Whole TransformerBlock for all samples; activations are (C, B*HW) = (16, 128)."""
    x = x_ref[...]                                               # (C, 128) f32

    def vec(name):                                               # (n, 1) f32 slice
        lo, hi = _VEC_IDX[name]
        return vec_ref[lo:hi, :]

    # ---- norm1 (RLN): per-sample mean/std over (C,H,W) via lane-masked reduce ----
    lane = jax.lax.broadcasted_iota(jnp.int32, (1, LANES), 1)
    m0 = (lane < HW).astype(jnp.float32)                         # sample-0 lanes
    m1 = 1.0 - m0                                                # sample-1 lanes
    inv_n = 1.0 / (DIM * HW)
    mean_l = (jnp.sum(x * m0) * inv_n) * m0 + (jnp.sum(x * m1) * inv_n) * m1
    d = x - mean_l                                               # (C, 128)
    d2 = d * d
    std0 = jnp.sqrt(jnp.sum(d2 * m0) * inv_n + EPS)
    std1 = jnp.sqrt(jnp.sum(d2 * m1) * inv_n + EPS)
    std_l = std0 * m0 + std1 * m1                                # (1, 128)
    xn = d / std_l * vec('rln_w') + vec('rln_b')                 # (C, 128) f32

    # ---- fused Q/K/V 1x1 conv (attention scale pre-folded into the Q rows) ----
    qkv = jnp.dot(w_ref[W_QKV0:W_QKV1, :], xn.astype(MM_DTYPE),
                  preferred_element_type=jnp.float32) + vec('b_qkv')   # (3C, 128)

    # ---- window attention == block-diagonal-masked full attention ----
    # Per head: sublane slices of qkv; scores via a transposed-LHS dot_general
    # (f32 so the mask add / max-subtract path stays f32); the head output is
    # written into VMEM scratch so per-head (128,128) temporaries die early.
    for h in range(NUM_HEADS):
        qh = qkv[h * HEAD_DIM:(h + 1) * HEAD_DIM, :]                       # (8, 128)
        kh = qkv[DIM + h * HEAD_DIM:DIM + (h + 1) * HEAD_DIM, :]           # (8, 128)
        vh = qkv[2 * DIM + h * HEAD_DIM:2 * DIM + (h + 1) * HEAD_DIM, :]   # (8, 128)
        s = jax.lax.dot_general(qh, kh, (((0,), (0,)), ((), ())),
                                preferred_element_type=jnp.float32)        # (128,128)
        s = s + bias_ref[h].astype(jnp.float32)                  # masked rel-pos bias
        mx = jnp.max(s, axis=-1, keepdims=True)
        e = jnp.exp(s - mx)
        p = e * pl.reciprocal(jnp.sum(e, axis=-1, keepdims=True), approx=True)
        # out[d, q] = sum_k vh[d, k] * p[q, k]   (rhs-transposed matmul)
        attn_sc[h * HEAD_DIM:(h + 1) * HEAD_DIM, :] = jax.lax.dot_general(
            vh, p, (((1,), (1,)), ((), ())), preferred_element_type=jnp.float32)

    # ---- proj 1x1 conv, x*rescale + rebias, residual ----
    rescale = std_l * vec('m1w') + vec('m1b')                    # (C, 128)
    rebias = mean_l * vec('m2w') + vec('m2b')                    # (C, 128)
    x1 = jnp.dot(w_ref[W_PROJ0:W_PROJ1, :], attn_sc[...].astype(MM_DTYPE),
                 preferred_element_type=jnp.float32) + vec('b_proj')
    x1 = x + x1 * rescale + rebias                               # (C, 128)

    # ---- MLP (1x1 -> ReLU -> 1x1) + residual (norm2 is Identity) ----
    h1 = jnp.dot(w_ref[W_MLP10:W_MLP11, :], x1.astype(MM_DTYPE),
                 preferred_element_type=jnp.float32) + vec('b_mlp1')
    h1 = jnp.maximum(h1, 0.0)
    y = jnp.dot(wm2_ref[...], h1.astype(MM_DTYPE),
                preferred_element_type=jnp.float32) + vec('b_mlp2')
    o_ref[...] = x1 + y


# ----------------------------- pallas wrapper -------------------------------
@jax.jit
def transformer_block(x_nchw, pp):
    """Forward of TransformerBlock (use_attn=True, conv_type=None, shift_size=0,
    mlp_norm=False) as one fused, lane-dense Pallas kernel invocation."""
    # NCHW -> (C, B*HW): channels on sublanes, batch folded into the 128 lanes.
    x_cf = jnp.transpose(x_nchw.reshape(B, DIM, HW).astype(jnp.float32),
                         (1, 0, 2)).reshape(DIM, LANES)

    out = pl.pallas_call(
        fused_block_kernel,
        out_shape=jax.ShapeDtypeStruct((DIM, LANES), jnp.float32),
        grid=(1,),
        in_specs=[pl.BlockSpec((DIM, LANES), lambda i: (0, 0)),
                  pl.BlockSpec((W_ROWS, DIM), lambda i: (0, 0)),
                  pl.BlockSpec((DIM, HIDDEN), lambda i: (0, 0)),
                  pl.BlockSpec((VEC_LEN, 1), lambda i: (0, 0)),
                  pl.BlockSpec((NUM_HEADS, LANES, LANES), lambda i: (0, 0, 0))],
        out_specs=pl.BlockSpec((DIM, LANES), lambda i: (0, 0)),
        scratch_shapes=[pltpu.VMEM((DIM, LANES), jnp.float32)],
        compiler_params=pltpu.CompilerParams(dimension_semantics=("arbitrary",)),
        cost_estimate=_COST,
    )(x_cf, pp['w_pack'], pp['w_mlp2'], pp['vec_pack'], pp['bias_full'])

    return jnp.transpose(out.reshape(DIM, B, HW), (1, 0, 2)).reshape(B, DIM, H, W)


# --------------------- host-side constants / parameter prep ------------------
def compute_rel_bias(p):
    """relative_positions buffer + meta MLP -> (heads, N, N) bias (constant)."""
    coords = jnp.stack(jnp.meshgrid(jnp.arange(WINDOW), jnp.arange(WINDOW),
                                    indexing='ij'))                     # (2, ws, ws)
    cf = coords.reshape(2, -1)
    rel = cf[:, :, None] - cf[:, None, :]                               # (2, N, N)
    rel = jnp.transpose(rel, (1, 2, 0)).astype(jnp.float32)             # (N, N, 2)
    rel_log = jnp.sign(rel) * jnp.log1p(jnp.abs(rel))
    h1 = jnp.maximum(rel_log @ p['meta_w1'].T + p['meta_b1'], 0.0)      # (N, N, 256)
    bias = h1 @ p['meta_w2'].T + p['meta_b2']                           # (N, N, heads)
    return jnp.transpose(bias, (2, 0, 1)).astype(jnp.float32)           # (heads, N, N)


def build_full_bias(rel_bias):
    """(heads, N, N) window bias -> (heads, B*HW, B*HW) masked full-attention bias.
    A token attends only within its own window of its own sample; window attention
    over all B*HW tokens is exactly this masked full attention (row-major order)."""
    t = jnp.arange(LANES)
    b_id, hw = t // HW, t % HW
    hi, wi = hw // W, hw % W
    win_id = b_id * NW + (hi // WINDOW) * (W // WINDOW) + (wi // WINDOW)
    pos_in = (hi % WINDOW) * WINDOW + (wi % WINDOW)
    same = win_id[:, None] == win_id[None, :]                           # (128, 128)
    bias = rel_bias[:, pos_in[:, None], pos_in[None, :]]                # (h, 128, 128)
    return jnp.where(same[None], bias, jnp.float32(NEG_BIAS))


def prepare_params(p):
    """Pack the per-tensor (PyTorch-style) parameters into the 4 kernel operands."""
    w_q = p['w_qkv'][:DIM] * SCALE                     # fold attention scale into Q
    w_pack = jnp.concatenate([w_q, p['w_qkv'][DIM:], p['w_proj'], p['w_mlp1']],
                             axis=0).astype(MM_DTYPE)                  # (128, 16)
    b_qkv = jnp.concatenate([p['b_qkv'][:DIM] * SCALE, p['b_qkv'][DIM:]], axis=0)
    vec_pack = jnp.concatenate([p['rln_w'], p['rln_b'],
                                p['meta1_w'], p['meta1_b'],
                                p['meta2_w'], p['meta2_b'],
                                b_qkv, p['b_proj'], p['b_mlp1'], p['b_mlp2']],
                               axis=0).astype(jnp.float32)             # (240, 1)
    assert vec_pack.shape == (VEC_LEN, 1)
    assert w_pack.shape == (W_ROWS, DIM)
    bias_full = build_full_bias(p['rel_bias']).astype(MM_DTYPE)        # (h, 128, 128)
    return dict(w_pack=w_pack, w_mlp2=p['w_mlp2'].astype(MM_DTYPE),
                vec_pack=vec_pack, bias_full=bias_full)


def init_params(key):
    ks = jax.random.split(key, 10)
    gain = (8 * NETWORK_DEPTH) ** (-0.25)
    std_v = gain * math.sqrt(2.0 / (DIM + DIM))
    std_qk = math.sqrt(2.0 / (DIM + 2 * DIM))        # w_shape[0] == dim*2 branch
    std_m1 = gain * math.sqrt(2.0 / (DIM + HIDDEN))
    std_m2 = gain * math.sqrt(2.0 / (HIDDEN + DIM))

    def conv1x1(k, cin, cout, std):                  # torch layout (out, in)
        return jax.random.normal(k, (cout, cin), jnp.float32) * std

    w_qk = conv1x1(ks[0], DIM, 2 * DIM, std_qk)
    w_v = conv1x1(ks[1], DIM, DIM, std_v)

    p = dict(
        # RLN
        rln_w=jnp.ones((DIM, 1), jnp.float32),
        rln_b=jnp.zeros((DIM, 1), jnp.float32),
        meta1_w=jax.random.normal(ks[5], (DIM, 1), jnp.float32) * 0.02,
        meta1_b=jnp.ones((DIM, 1), jnp.float32),
        meta2_w=jax.random.normal(ks[6], (DIM, 1), jnp.float32) * 0.02,
        meta2_b=jnp.zeros((DIM, 1), jnp.float32),
        # fused QK+V 1x1 conv, torch (out, in) layout
        w_qkv=jnp.concatenate([w_qk, w_v], axis=0),            # (3C, C)
        b_qkv=jnp.zeros((3 * DIM, 1), jnp.float32),
        # proj 1x1 conv
        w_proj=conv1x1(ks[2], DIM, DIM, std_v),                # (C, C)
        b_proj=jnp.zeros((DIM, 1), jnp.float32),
        # MLP 1x1 convs
        w_mlp1=conv1x1(ks[3], DIM, HIDDEN, std_m1),            # (hidden, C)
        b_mlp1=jnp.zeros((HIDDEN, 1), jnp.float32),
        w_mlp2=conv1x1(ks[4], HIDDEN, DIM, std_m2),            # (C, hidden)
        b_mlp2=jnp.zeros((DIM, 1), jnp.float32),
        # meta MLP of WindowAttention (Linear(2,256) -> ReLU -> Linear(256,heads))
        meta_w1=jax.random.normal(ks[7], (256, 2), jnp.float32) * 0.1,
        meta_b1=jax.random.normal(ks[8], (256,), jnp.float32) * 0.1,
        meta_w2=jax.random.normal(ks[9], (NUM_HEADS, 256), jnp.float32) * 0.05,
        meta_b2=jnp.zeros((NUM_HEADS,), jnp.float32),
    )
    p['rel_bias'] = compute_rel_bias(p)                        # (heads, N, N)
    return p


# --------------------------- pure-JAX reference ------------------------------
def window_partition(x, ws):
    bx, hx, wx, cx = x.shape
    x = x.reshape(bx, hx // ws, ws, wx // ws, ws, cx)
    return jnp.transpose(x, (0, 1, 3, 2, 4, 5)).reshape(-1, ws * ws, cx)


def window_reverse(windows, ws, hx, wx):
    bx = windows.shape[0] // (hx * wx // ws // ws)
    x = windows.reshape(bx, hx // ws, wx // ws, ws, ws, -1)
    return jnp.transpose(x, (0, 1, 3, 2, 4, 5)).reshape(bx, hx, wx, -1)


def reference_forward(x_nchw, p):
    """Literal (windowed) re-implementation of the PyTorch forward in plain JAX."""
    x = x_nchw.astype(jnp.float32)
    identity = x
    mean = jnp.mean(x, axis=(1, 2, 3), keepdims=True)
    std = jnp.sqrt(jnp.mean((x - mean) ** 2, axis=(1, 2, 3), keepdims=True) + EPS)
    rw = p['rln_w'].reshape(1, DIM, 1, 1)
    rb = p['rln_b'].reshape(1, DIM, 1, 1)
    xn = (x - mean) / std * rw + rb
    rescale = std * p['meta1_w'].reshape(1, DIM, 1, 1) + p['meta1_b'].reshape(1, DIM, 1, 1)
    rebias = mean * p['meta2_w'].reshape(1, DIM, 1, 1) + p['meta2_b'].reshape(1, DIM, 1, 1)

    qkv = jnp.einsum('oc,bchw->bohw', p['w_qkv'], xn) + p['b_qkv'].reshape(1, 3 * DIM, 1, 1)
    qkv_nhwc = jnp.transpose(qkv, (0, 2, 3, 1))
    win = window_partition(qkv_nhwc, WINDOW)                    # (BWIN, N, 3C)
    r = win.reshape(BWIN, N, 3, NUM_HEADS, HEAD_DIM)
    r = jnp.transpose(r, (2, 0, 3, 1, 4))
    q, k, v = r[0] * SCALE, r[1], r[2]
    attn = jnp.einsum('bhqd,bhkd->bhqk', q, k) + p['rel_bias'][None]
    attn = jax.nn.softmax(attn, axis=-1)
    o = jnp.einsum('bhqk,bhkd->bhqd', attn, v)
    o = jnp.transpose(o, (0, 2, 1, 3)).reshape(BWIN, N, DIM)
    attn_out = jnp.transpose(window_reverse(o, WINDOW, H, W), (0, 3, 1, 2))  # NCHW

    proj = jnp.einsum('oc,bchw->bohw', p['w_proj'], attn_out) + p['b_proj'].reshape(1, DIM, 1, 1)
    x = identity + proj * rescale + rebias
    identity2 = x
    h1 = jax.nn.relu(jnp.einsum('oc,bchw->bohw', p['w_mlp1'], x)
                     + p['b_mlp1'].reshape(1, HIDDEN, 1, 1))
    y = jnp.einsum('oc,bchw->bohw', p['w_mlp2'], h1) + p['b_mlp2'].reshape(1, DIM, 1, 1)
    return identity2 + y


# ---------------------------------- main -------------------------------------
if __name__ == "__main__":
    key = jax.random.PRNGKey(0)
    kx, kp = jax.random.split(key)
    x = jax.random.normal(kx, (B, DIM, H, W), jnp.float32)     # NCHW like PyTorch
    params = init_params(kp)
    packed = prepare_params(params)

    out = jax.block_until_ready(transformer_block(x, packed))
    ref = reference_forward(x, params)

    assert out.shape == (B, DIM, H, W), out.shape
    if not jnp.allclose(out, ref, atol=TOL, rtol=TOL):
        raise AssertionError(
            f"mismatch vs reference, max abs err = {jnp.max(jnp.abs(out - ref))}")
    print("KERNEL_OK")
</pallas_src>

<mosaic_0001>
module attributes {stable_mosaic.version = 11 : i64} {
  func.func @fused_block_kernel(%arg0: i32, %arg1: memref<16x128xf32, #tpu.memory_space<vmem>>, %arg2: memref<128x16xbf16, #tpu.memory_space<vmem>>, %arg3: memref<16x64xbf16, #tpu.memory_space<vmem>>, %arg4: memref<240x1xf32, #tpu.memory_space<vmem>>, %arg5: memref<2x128x128xbf16, #tpu.memory_space<vmem>>, %arg6: memref<16x128xf32, #tpu.memory_space<vmem>>, %arg7: memref<16x128xf32, #tpu.memory_space<vmem>>) attributes {dimension_semantics = [#tpu.dimension_semantics<arbitrary>], iteration_bounds = array<i64: 1>, scalar_prefetch = 0 : i64, scratch_operands = 1 : i64, tpu.core_type = #tpu.core_type<tc>, window_params = [{pipeline_mode = #tpu.pipeline_mode<synchronous>, transform_indices = @transform_0, window_bounds = array<i64: 16, 128>}, {pipeline_mode = #tpu.pipeline_mode<synchronous>, transform_indices = @transform_1, window_bounds = array<i64: 128, 16>}, {pipeline_mode = #tpu.pipeline_mode<synchronous>, transform_indices = @transform_2, window_bounds = array<i64: 16, 64>}, {pipeline_mode = #tpu.pipeline_mode<synchronous>, transform_indices = @transform_3, window_bounds = array<i64: 240, 1>}, {pipeline_mode = #tpu.pipeline_mode<synchronous>, transform_indices = @transform_4, window_bounds = array<i64: 2, 128, 128>}, {pipeline_mode = #tpu.pipeline_mode<synchronous>, transform_indices = @transform_5, window_bounds = array<i64: 16, 128>}]} {
    %c0 = arith.constant 0 : index
    %c0_0 = arith.constant 0 : index
    %0 = vector.load %arg1[%c0, %c0_0] : memref<16x128xf32, #tpu.memory_space<vmem>>, vector<16x128xf32>
    %1 = tpu.iota {dimensions = array<i32: 1>} : vector<1x128xi32>
    %c64_i32 = arith.constant 64 : i32
    %2 = vector.broadcast %c64_i32 : i32 to vector<1x128xi32>
    %3 = arith.cmpi slt, %1, %2 : vector<1x128xi32>
    %4 = arith.extui %3 : vector<1x128xi1> to vector<1x128xi32>
    %5 = arith.sitofp %4 : vector<1x128xi32> to vector<1x128xf32>
    %cst = arith.constant 1.000000e+00 : f32
    %6 = vector.broadcast %cst : f32 to vector<1x128xf32>
    %7 = arith.subf %6, %5 : vector<1x128xf32>
    %8 = vector.broadcast %5 : vector<1x128xf32> to vector<16x128xf32>
    %9 = arith.mulf %0, %8 : vector<16x128xf32>
    %10 = vector.shape_cast %9 : vector<16x128xf32> to vector<1x16x128xf32>
    %cst_1 = arith.constant dense<0.000000e+00> : vector<1xf32>
    %11 = vector.multi_reduction <add>, %10, %cst_1 [1, 2] : vector<1x16x128xf32> to vector<1xf32>
    %12 = vector.shape_cast %11 : vector<1xf32> to vector<1x1x1xf32>
    %13 = vector.extract %12[0, 0, 0] : f32 from vector<1x1x1xf32>
    %cst_2 = arith.constant 9.765625E-4 : f32
    %14 = arith.mulf %13, %cst_2 : f32
    %15 = vector.broadcast %14 : f32 to vector<1x128xf32>
    %16 = arith.mulf %15, %5 : vector<1x128xf32>
    %17 = vector.broadcast %7 : vector<1x128xf32> to vector<16x128xf32>
    %18 = arith.mulf %0, %17 : vector<16x128xf32>
    %19 = vector.shape_cast %18 : vector<16x128xf32> to vector<1x16x128xf32>
    %cst_3 = arith.constant dense<0.000000e+00> : vector<1xf32>
    %20 = vector.multi_reduction <add>, %19, %cst_3 [1, 2] : vector<1x16x128xf32> to vector<1xf32>
    %21 = vector.shape_cast %20 : vector<1xf32> to vector<1x1x1xf32>
    %22 = vector.extract %21[0, 0, 0] : f32 from vector<1x1x1xf32>
    %cst_4 = arith.constant 9.765625E-4 : f32
    %23 = arith.mulf %22, %cst_4 : f32
    %24 = vector.broadcast %23 : f32 to vector<1x128xf32>
    %25 = arith.mulf %24, %7 : vector<1x128xf32>
    %26 = arith.addf %16, %25 : vector<1x128xf32>
    %27 = vector.broadcast %26 : vector<1x128xf32> to vector<16x128xf32>
    %28 = arith.subf %0, %27 : vector<16x128xf32>
    %29 = arith.mulf %28, %28 : vector<16x128xf32>
    %30 = vector.broadcast %5 : vector<1x128xf32> to vector<16x128xf32>
    %31 = arith.mulf %29, %30 : vector<16x128xf32>
    %32 = vector.shape_cast %31 : vector<16x128xf32> to vector<1x16x128xf32>
    %cst_5 = arith.constant dense<0.000000e+00> : vector<1xf32>
    %33 = vector.multi_reduction <add>, %32, %cst_5 [1, 2] : vector<1x16x128xf32> to vector<1xf32>
    %34 = vector.shape_cast %33 : vector<1xf32> to vector<1x1x1xf32>
    %35 = vector.extract %34[0, 0, 0] : f32 from vector<1x1x1xf32>
    %cst_6 = arith.constant 9.765625E-4 : f32
    %36 = arith.mulf %35, %cst_6 : f32
    %cst_7 = arith.constant 9.99999974E-6 : f32
    %37 = arith.addf %36, %cst_7 : f32
    %38 = math.sqrt %37 : f32
    %39 = vector.broadcast %7 : vector<1x128xf32> to vector<16x128xf32>
    %40 = arith.mulf %29, %39 : vector<16x128xf32>
    %41 = vector.shape_cast %40 : vector<16x128xf32> to vector<1x16x128xf32>
    %cst_8 = arith.constant dense<0.000000e+00> : vector<1xf32>
    %42 = vector.multi_reduction <add>, %41, %cst_8 [1, 2] : vector<1x16x128xf32> to vector<1xf32>
    %43 = vector.shape_cast %42 : vector<1xf32> to vector<1x1x1xf32>
    %44 = vector.extract %43[0, 0, 0] : f32 from vector<1x1x1xf32>
    %cst_9 = arith.constant 9.765625E-4 : f32
    %45 = arith.mulf %44, %cst_9 : f32
    %cst_10 = arith.constant 9.99999974E-6 : f32
    %46 = arith.addf %45, %cst_10 : f32
    %47 = math.sqrt %46 : f32
    %48 = vector.broadcast %38 : f32 to vector<1x128xf32>
    %49 = arith.mulf %48, %5 : vector<1x128xf32>
    %50 = vector.broadcast %47 : f32 to vector<1x128xf32>
    %51 = arith.mulf %50, %7 : vector<1x128xf32>
    %52 = arith.addf %49, %51 : vector<1x128xf32>
    %53 = vector.broadcast %52 : vector<1x128xf32> to vector<16x128xf32>
    %54 = arith.divf %28, %53 : vector<16x128xf32>
    %c0_11 = arith.constant 0 : index
    %c0_12 = arith.constant 0 : index
    %55 = vector.load %arg4[%c0_11, %c0_12] : memref<240x1xf32, #tpu.memory_space<vmem>>, vector<16x1xf32>
    %56 = vector.broadcast %55 : vector<16x1xf32> to vector<16x128xf32>
    %57 = arith.mulf %54, %56 : vector<16x128xf32>
    %c16 = arith.constant 16 : index
    %c0_13 = arith.constant 0 : index
    %58 = vector.load %arg4[%c16, %c0_13] : memref<240x1xf32, #tpu.memory_space<vmem>>, vector<16x1xf32>
    %59 = vector.broadcast %58 : vector<16x1xf32> to vector<16x128xf32>
    %60 = arith.addf %57, %59 : vector<16x128xf32>
    %c0_14 = arith.constant 0 : index
    %c0_15 = arith.constant 0 : index
    %61 = vector.load %arg2[%c0_14, %c0_15] : memref<128x16xbf16, #tpu.memory_space<vmem>>, vector<48x16xbf16>
    %62 = arith.truncf %60 : vector<16x128xf32> to vector<16x128xbf16>
    %cst_16 = arith.constant dense<0.000000e+00> : vector<48x128xf32>
    %63 = tpu.matmul %61, %62, %cst_16 {dimension_numbers = #tpu.dot_dimension_numbers<[1], [0], [0], [1], [0, 0, 1, 1], [], []>} : vector<48x16xbf16>, vector<16x128xbf16>, vector<48x128xf32> -> vector<48x128xf32>
    %c96 = arith.constant 96 : index
    %c0_17 = arith.constant 0 : index
    %64 = vector.load %arg4[%c96, %c0_17] : memref<240x1xf32, #tpu.memory_space<vmem>>, vector<48x1xf32>
    %65 = vector.broadcast %64 : vector<48x1xf32> to vector<48x128xf32>
    %66 = arith.addf %63, %65 : vector<48x128xf32>
    %67 = vector.extract_strided_slice %66 {offsets = [0, 0], sizes = [8, 128], strides = [1, 1]} : vector<48x128xf32> to vector<8x128xf32>
    %68 = vector.extract_strided_slice %66 {offsets = [16, 0], sizes = [8, 128], strides = [1, 1]} : vector<48x128xf32> to vector<8x128xf32>
    %69 = vector.extract_strided_slice %66 {offsets = [32, 0], sizes = [8, 128], strides = [1, 1]} : vector<48x128xf32> to vector<8x128xf32>
    %cst_18 = arith.constant dense<0.000000e+00> : vector<128x128xf32>
    %70 = tpu.matmul %67, %68, %cst_18 {dimension_numbers = #tpu.dot_dimension_numbers<[0], [0], [1], [1], [0, 1, 1, 1], [], []>} : vector<8x128xf32>, vector<8x128xf32>, vector<128x128xf32> -> vector<128x128xf32>
    %c0_19 = arith.constant 0 : index
    %c0_20 = arith.constant 0 : index
    %c0_21 = arith.constant 0 : index
    %71 = vector.load %arg5[%c0_19, %c0_20, %c0_21] : memref<2x128x128xbf16, #tpu.memory_space<vmem>>, vector<1x128x128xbf16>
    %72 = vector.shape_cast %71 : vector<1x128x128xbf16> to vector<128x128xbf16>
    %73 = arith.extf %72 : vector<128x128xbf16> to vector<128x128xf32>
    %74 = arith.addf %70, %73 : vector<128x128xf32>
    %cst_22 = arith.constant dense<0xFF800000> : vector<128xf32>
    %75 = vector.multi_reduction <maximumf>, %74, %cst_22 [1] : vector<128x128xf32> to vector<128xf32>
    %76 = vector.shape_cast %75 : vector<128xf32> to vector<128x1xf32>
    %77 = vector.broadcast %76 : vector<128x1xf32> to vector<128x128xf32>
    %78 = arith.subf %74, %77 : vector<128x128xf32>
    %79 = math.exp %78 : vector<128x128xf32>
    %cst_23 = arith.constant dense<0.000000e+00> : vector<128xf32>
    %80 = vector.multi_reduction <add>, %79, %cst_23 [1] : vector<128x128xf32> to vector<128xf32>
    %81 = vector.shape_cast %80 : vector<128xf32> to vector<128x1xf32>
    %82 = tpu.reciprocal %81 {approx = true} : vector<128x1xf32> -> vector<128x1xf32>
    %83 = vector.broadcast %82 : vector<128x1xf32> to vector<128x128xf32>
    %84 = arith.mulf %79, %83 : vector<128x128xf32>
    %cst_24 = arith.constant dense<0.000000e+00> : vector<8x128xf32>
    %85 = tpu.matmul %69, %84, %cst_24 {dimension_numbers = #tpu.dot_dimension_numbers<[1], [1], [0], [0], [0, 0, 1, 0], [], []>} : vector<8x128xf32>, vector<128x128xf32>, vector<8x128xf32> -> vector<8x128xf32>
    %c0_25 = arith.constant 0 : index
    %c0_26 = arith.constant 0 : index
    %86 = vector.load %arg7[%c0_25, %c0_26] : memref<16x128xf32, #tpu.memory_space<vmem>>, vector<8x128xf32>
    tpu.vector_store %arg7[%c0_25, %c0_26], %85 {strides = array<i32>} : memref<16x128xf32, #tpu.memory_space<vmem>>, vector<8x128xf32>,
    %87 = vector.extract_strided_slice %66 {offsets = [8, 0], sizes = [8, 128], strides = [1, 1]} : vector<48x128xf32> to vector<8x128xf32>
    %88 = vector.extract_strided_slice %66 {offsets = [24, 0], sizes = [8, 128], strides = [1, 1]} : vector<48x128xf32> to vector<8x128xf32>
    %89 = vector.extract_strided_slice %66 {offsets = [40, 0], sizes = [8, 128], strides = [1, 1]} : vector<48x128xf32> to vector<8x128xf32>
    %cst_27 = arith.constant dense<0.000000e+00> : vector<128x128xf32>
    %90 = tpu.matmul %87, %88, %cst_27 {dimension_numbers = #tpu.dot_dimension_numbers<[0], [0], [1], [1], [0, 1, 1, 1], [], []>} : vector<8x128xf32>, vector<8x128xf32>, vector<128x128xf32> -> vector<128x128xf32>
    %c1 = arith.constant 1 : index
    %c0_28 = arith.constant 0 : index
    %c0_29 = arith.constant 0 : index
    %91 = vector.load %arg5[%c1, %c0_28, %c0_29] : memref<2x128x128xbf16, #tpu.memory_space<vmem>>, vector<1x128x128xbf16>
    %92 = vector.shape_cast %91 : vector<1x128x128xbf16> to vector<128x128xbf16>
    %93 = arith.extf %92 : vector<128x128xbf16> to vector<128x128xf32>
    %94 = arith.addf %90, %93 : vector<128x128xf32>
    %cst_30 = arith.constant dense<0xFF800000> : vector<128xf32>
    %95 = vector.multi_reduction <maximumf>, %94, %cst_30 [1] : vector<128x128xf32> to vector<128xf32>
    %96 = vector.shape_cast %95 : vector<128xf32> to vector<128x1xf32>
    %97 = vector.broadcast %96 : vector<128x1xf32> to vector<128x128xf32>
    %98 = arith.subf %94, %97 : vector<128x128xf32>
    %99 = math.exp %98 : vector<128x128xf32>
    %cst_31 = arith.constant dense<0.000000e+00> : vector<128xf32>
    %100 = vector.multi_reduction <add>, %99, %cst_31 [1] : vector<128x128xf32> to vector<128xf32>
    %101 = vector.shape_cast %100 : vector<128xf32> to vector<128x1xf32>
    %102 = tpu.reciprocal %101 {approx = true} : vector<128x1xf32> -> vector<128x1xf32>
    %103 = vector.broadcast %102 : vector<128x1xf32> to vector<128x128xf32>
    %104 = arith.mulf %99, %103 : vector<128x128xf32>
    %cst_32 = arith.constant dense<0.000000e+00> : vector<8x128xf32>
    %105 = tpu.matmul %89, %104, %cst_32 {dimension_numbers = #tpu.dot_dimension_numbers<[1], [1], [0], [0], [0, 0, 1, 0], [], []>} : vector<8x128xf32>, vector<128x128xf32>, vector<8x128xf32> -> vector<8x128xf32>
    %c8 = arith.constant 8 : index
    %c0_33 = arith.constant 0 : index
    %106 = vector.load %arg7[%c8, %c0_33] : memref<16x128xf32, #tpu.memory_space<vmem>>, vector<8x128xf32>
    tpu.vector_store %arg7[%c8, %c0_33], %105 {strides = array<i32>} : memref<16x128xf32, #tpu.memory_space<vmem>>, vector<8x128xf32>,
    %c32 = arith.constant 32 : index
    %c0_34 = arith.constant 0 : index
    %107 = vector.load %arg4[%c32, %c0_34] : memref<240x1xf32, #tpu.memory_space<vmem>>, vector<16x1xf32>
    %108 = vector.broadcast %52 : vector<1x128xf32> to vector<16x128xf32>
    %109 = vector.broadcast %107 : vector<16x1xf32> to vector<16x128xf32>
    %110 = arith.mulf %108, %109 : vector<16x128xf32>
    %c48 = arith.constant 48 : index
    %c0_35 = arith.constant 0 : index
    %111 = vector.load %arg4[%c48, %c0_35] : memref<240x1xf32, #tpu.memory_space<vmem>>, vector<16x1xf32>
    %112 = vector.broadcast %111 : vector<16x1xf32> to vector<16x128xf32>
    %113 = arith.addf %110, %112 : vector<16x128xf32>
    %c64 = arith.constant 64 : index
    %c0_36 = arith.constant 0 : index
    %114 = vector.load %arg4[%c64, %c0_36] : memref<240x1xf32, #tpu.memory_space<vmem>>, vector<16x1xf32>
    %115 = vector.broadcast %26 : vector<1x128xf32> to vector<16x128xf32>
    %116 = vector.broadcast %114 : vector<16x1xf32> to vector<16x128xf32>
    %117 = arith.mulf %115, %116 : vector<16x128xf32>
    %c80 = arith.constant 80 : index
    %c0_37 = arith.constant 0 : index
    %118 = vector.load %arg4[%c80, %c0_37] : memref<240x1xf32, #tpu.memory_space<vmem>>, vector<16x1xf32>
    %119 = vector.broadcast %118 : vector<16x1xf32> to vector<16x128xf32>
    %120 = arith.addf %117, %119 : vector<16x128xf32>
    %c48_38 = arith.constant 48 : index
    %c0_39 = arith.constant 0 : index
    %121 = vector.load %arg2[%c48_38, %c0_39] : memref<128x16xbf16, #tpu.memory_space<vmem>>, vector<16x16xbf16>
    %c0_40 = arith.constant 0 : index
    %c0_41 = arith.constant 0 : index
    %122 = vector.load %arg7[%c0_40, %c0_41] : memref<16x128xf32, #tpu.memory_space<vmem>>, vector<16x128xf32>
    %123 = arith.truncf %122 : vector<16x128xf32> to vector<16x128xbf16>
    %cst_42 = arith.constant dense<0.000000e+00> : vector<16x128xf32>
    %124 = tpu.matmul %121, %123, %cst_42 {dimension_numbers = #tpu.dot_dimension_numbers<[1], [0], [0], [1], [0, 0, 1, 1], [], []>} : vector<16x16xbf16>, vector<16x128xbf16>, vector<16x128xf32> -> vector<16x128xf32>
    %c144 = arith.constant 144 : index
    %c0_43 = arith.constant 0 : index
    %125 = vector.load %arg4[%c144, %c0_43] : memref<240x1xf32, #tpu.memory_space<vmem>>, vector<16x1xf32>
    %126 = vector.broadcast %125 : vector<16x1xf32> to vector<16x128xf32>
    %127 = arith.addf %124, %126 : vector<16x128xf32>
    %128 = arith.mulf %127, %113 : vector<16x128xf32>
    %129 = arith.addf %0, %128 : vector<16x128xf32>
    %130 = arith.addf %129, %120 : vector<16x128xf32>
    %c64_44 = arith.constant 64 : index
    %c0_45 = arith.constant 0 : index
    %131 = vector.load %arg2[%c64_44, %c0_45] : memref<128x16xbf16, #tpu.memory_space<vmem>>, vector<64x16xbf16>
    %132 = arith.truncf %130 : vector<16x128xf32> to vector<16x128xbf16>
    %cst_46 = arith.constant dense<0.000000e+00> : vector<64x128xf32>
    %133 = tpu.matmul %131, %132, %cst_46 {dimension_numbers = #tpu.dot_dimension_numbers<[1], [0], [0], [1], [0, 0, 1, 1], [], []>} : vector<64x16xbf16>, vector<16x128xbf16>, vector<64x128xf32> -> vector<64x128xf32>
    %c160 = arith.constant 160 : index
    %c0_47 = arith.constant 0 : index
    %134 = vector.load %arg4[%c160, %c0_47] : memref<240x1xf32, #tpu.memory_space<vmem>>, vector<64x1xf32>
    %135 = vector.broadcast %134 : vector<64x1xf32> to vector<64x128xf32>
    %136 = arith.addf %133, %135 : vector<64x128xf32>
    %cst_48 = arith.constant 0.000000e+00 : f32
    %137 = vector.broadcast %cst_48 : f32 to vector<64x128xf32>
    %138 = arith.maximumf %136, %137 : vector<64x128xf32>
    %c0_49 = arith.constant 0 : index
    %c0_50 = arith.constant 0 : index
    %139 = vector.load %arg3[%c0_49, %c0_50] : memref<16x64xbf16, #tpu.memory_space<vmem>>, vector<16x64xbf16>
    %140 = arith.truncf %138 : vector<64x128xf32> to vector<64x128xbf16>
    %cst_51 = arith.constant dense<0.000000e+00> : vector<16x128xf32>
    %141 = tpu.matmul %139, %140, %cst_51 {dimension_numbers = #tpu.dot_dimension_numbers<[1], [0], [0], [1], [0, 0, 1, 1], [], []>} : vector<16x64xbf16>, vector<64x128xbf16>, vector<16x128xf32> -> vector<16x128xf32>
    %c224 = arith.constant 224 : index
    %c0_52 = arith.constant 0 : index
    %142 = vector.load %arg4[%c224, %c0_52] : memref<240x1xf32, #tpu.memory_space<vmem>>, vector<16x1xf32>
    %143 = vector.broadcast %142 : vector<16x1xf32> to vector<16x128xf32>
    %144 = arith.addf %141, %143 : vector<16x128xf32>
    %145 = arith.addf %130, %144 : vector<16x128xf32>
    %c0_53 = arith.constant 0 : index
    %c0_54 = arith.constant 0 : index
    %146 = vector.load %arg6[%c0_53, %c0_54] : memref<16x128xf32, #tpu.memory_space<vmem>>, vector<16x128xf32>
    tpu.vector_store %arg6[%c0_53, %c0_54], %145 {strides = array<i32>} : memref<16x128xf32, #tpu.memory_space<vmem>>, vector<16x128xf32>,
    return
  }
  func.func @transform_0(%arg0: i32) -> (i32, i32) {
    %c0_i32 = arith.constant 0 : i32
    %c0_i32_0 = arith.constant 0 : i32
    %c0_i32_1 = arith.constant 0 : i32
    return %c0_i32, %c0_i32_0 : i32, i32
  }
  func.func @transform_1(%arg0: i32) -> (i32, i32) {
    %c0_i32 = arith.constant 0 : i32
    %c0_i32_0 = arith.constant 0 : i32
    %c0_i32_1 = arith.constant 0 : i32
    return %c0_i32, %c0_i32_0 : i32, i32
  }
  func.func @transform_2(%arg0: i32) -> (i32, i32) {
    %c0_i32 = arith.constant 0 : i32
    %c0_i32_0 = arith.constant 0 : i32
    %c0_i32_1 = arith.constant 0 : i32
    return %c0_i32, %c0_i32_0 : i32, i32
  }
  func.func @transform_3(%arg0: i32) -> (i32, i32) {
    %c0_i32 = arith.constant 0 : i32
    %c0_i32_0 = arith.constant 0 : i32
    %c0_i32_1 = arith.constant 0 : i32
    return %c0_i32, %c0_i32_0 : i32, i32
  }
  func.func @transform_4(%arg0: i32) -> (i32, i32, i32) {
    %c0_i32 = arith.constant 0 : i32
    %c0_i32_0 = arith.constant 0 : i32
    %c0_i32_1 = arith.constant 0 : i32
    %c0_i32_2 = arith.constant 0 : i32
    return %c0_i32, %c0_i32_0, %c0_i32_1 : i32, i32, i32
  }
  func.func @transform_5(%arg0: i32) -> (i32, i32) {
    %c0_i32 = arith.constant 0 : i32
    %c0_i32_0 = arith.constant 0 : i32
    %c0_i32_1 = arith.constant 0 : i32
    return %c0_i32, %c0_i32_0 : i32, i32
  }
}

</mosaic_0001>

<llo_original>
// kernel: transformer_block.1
$region0: #{transformer_block.1}
  #allocation0 [shape = 'u32[]', space=smem, size = 0x4, offset = 0x4, fixed_abs, tag = 'smem constant byte address 0x4 - core index']
  #allocation1 [shape = 'u32[144,128]{1,0:T(1,128)}', space=vmem, size = 0x12000, scoped, tag = 'internal scratch']
  #allocation2 [shape = 'f32[16,128]{1,0:T(8,128)}', space=vmem, size = 0x2000, scoped, tag = 'scratch operand']
  %s0 = inlined_call_operand.vmem [shape: f32[16,128], index: 0, kind: input, shape index: {}]
  %s1 = inlined_call_operand.vmem [shape: bf16[128,16], index: 1, kind: input, shape index: {}]
  %s2 = inlined_call_operand.vmem [shape: bf16[16,64], index: 2, kind: input, shape index: {}]
  %s3 = inlined_call_operand.vmem [shape: f32[240,1], index: 3, kind: input, shape index: {}]
  %s4 = inlined_call_operand.vmem [shape: bf16[2,128,128], index: 4, kind: input, shape index: {}]
  %s5 = inlined_call_operand.vmem [shape: f32[16,128], index: 5, kind: output, shape index: {}]
  %s6 = sld [smem:[#allocation0]]
  $region30: #{transformer_block.1} parent=0
    _
  %s8 = ssub.s32 1, %s6
  %s9 = scalar_select 0, %s8, %s6
  // Predicated region
  $region2: #{transformer_block.1} parent=0 // pred_check
    _
  $region3: #{transformer_block.1} parent=0 // pred_check_branch
    %11 = sbr.rel (0) target = $region5
  $region4: #{transformer_block.1} parent=0 // pred_region
    _
  $region5: #{transformer_block.1} parent=0 // pred_fallthru
    _
  // Predicated region
  $region6: #{transformer_block.1} parent=0 // pred_check
    _
  $region7: #{transformer_block.1} parent=0 // pred_check_branch
    %13 = sbr.rel (0) target = $region9
  $region8: #{transformer_block.1} parent=0 // pred_region
    _
  $region9: #{transformer_block.1} parent=0 // pred_fallthru
    _
  // Predicated region
  $region10: #{transformer_block.1} parent=0 // pred_check
    _
  $region11: #{transformer_block.1} parent=0 // pred_check_branch
    %15 = sbr.rel (0) target = $region13
  $region12: #{transformer_block.1} parent=0 // pred_region
    _
  $region13: #{transformer_block.1} parent=0 // pred_fallthru
    _
  // Predicated region
  $region14: #{transformer_block.1} parent=0 // pred_check
    _
  $region15: #{transformer_block.1} parent=0 // pred_check_branch
    %17 = sbr.rel (0) target = $region17
  $region16: #{transformer_block.1} parent=0 // pred_region
    _
  $region17: #{transformer_block.1} parent=0 // pred_fallthru
    _
  // Predicated region
  $region18: #{transformer_block.1} parent=0 // pred_check
    _
  $region19: #{transformer_block.1} parent=0 // pred_check_branch
    %19 = sbr.rel (0) target = $region21
  $region20: #{transformer_block.1} parent=0 // pred_region
    _
  $region21: #{transformer_block.1} parent=0 // pred_fallthru
    _
  %v21 = vld [vmem:[%s0] sm:$0xff]
  %v22 = vld [vmem:[%s0 + $0x8] sm:$0xff]
  %v23 = vlaneseq
  %v24 = vand.u32 %v23, 127
  %vm25 = vcmp.lt.s32.totalorder %v24, 64
  %v26 = vsel %vm25, 1, 0
  %v27 = vcvt.s32.f32 %v26
  %v28 = vsub.f32 1.0, %v27
  %v29 = vmul.f32 %v21, %v27
  %v30 = vmul.f32 %v22, %v27
  %v31 = vadd.f32 %v29, %v30
  %32 = vadd.xlane.f32.xlu0 %v31
  %v33 = vpop.xlane.xlu0 %32
  %v34 = vrot.slane %v33, 4
  %v35 = vadd.f32 %v33, %v34
  %v36 = vrot.slane %v35, 2
  %v37 = vadd.f32 %v35, %v36
  %v38 = vrot.slane %v37, 1
  %v39 = vadd.f32 %v37, %v38
  %s40 = vtos %v39
  %s41 = smul.f32 %s40, 0.0009765625
  %v42 = vstv %s41
  %v43 = vmul.f32 %v42, %v27
  %v44 = vmul.f32 %v21, %v28
  %v45 = vmul.f32 %v22, %v28
  %v46 = vadd.f32 %v44, %v45
  %47 = vadd.xlane.f32.xlu0 %v46
  %v48 = vpop.xlane.xlu0 %47
  %v49 = vrot.slane %v48, 4
  %v50 = vadd.f32 %v48, %v49
  %v51 = vrot.slane %v50, 2
  %v52 = vadd.f32 %v50, %v51
  %v53 = vrot.slane %v52, 1
  %v54 = vadd.f32 %v52, %v53
  %s55 = vtos %v54
  %s56 = smul.f32 %s55, 0.0009765625
  %v57 = vstv %s56
  %v58 = vmul.f32 %v57, %v28
  %v59 = vadd.f32 %v43, %v58
  %v60 = vsub.f32 %v21, %v59
  %v61 = vsub.f32 %v22, %v59
  %v62 = vmul.f32 %v60, %v60
  %v63 = vmul.f32 %v61, %v61
  %v64 = vmul.f32 %v62, %v27
  %v65 = vmul.f32 %v63, %v27
  %v66 = vadd.f32 %v64, %v65
  %67 = vadd.xlane.f32.xlu0 %v66
  %v68 = vpop.xlane.xlu0 %67
  %v69 = vrot.slane %v68, 4
  %v70 = vadd.f32 %v68, %v69
  %v71 = vrot.slane %v70, 2
  %v72 = vadd.f32 %v70, %v71
  %v73 = vrot.slane %v72, 1
  %v74 = vadd.f32 %v72, %v73
  %s75 = vtos %v74
  %s76 = smul.f32 %s75, 0.0009765625
  %s77 = sadd.f32 %s76, 1e-05
  %v78 = vstv %s77
  %v79 = vrsqrt.pop %v78
  %v80 = vmul.f32 %v78, %v79
  %vm81 = vcmp.eq.f32.partialorder %v78, inf
  %v82 = vsel %vm81, %v78, %v80
  %vm83 = vcmp.eq.f32.partialorder %v78, 0.0
  %v84 = vand.u32 %v78, 2147483648
  %v85 = vsel %vm83, %v84, %v82
  %s86 = vtos %v85
  %v87 = vmul.f32 %v62, %v28
  %v88 = vmul.f32 %v63, %v28
  %v89 = vadd.f32 %v87, %v88
  %90 = vadd.xlane.f32.xlu0 %v89
  %v91 = vpop.xlane.xlu0 %90
  %v92 = vrot.slane %v91, 4
  %v93 = vadd.f32 %v91, %v92
  %v94 = vrot.slane %v93, 2
  %v95 = vadd.f32 %v93, %v94
  %v96 = vrot.slane %v95, 1
  %v97 = vadd.f32 %v95, %v96
  %s98 = vtos %v97
  %s99 = smul.f32 %s98, 0.0009765625
  %s100 = sadd.f32 %s99, 1e-05
  %v101 = vstv %s100
  %v102 = vrsqrt.pop %v101
  %v103 = vmul.f32 %v101, %v102
  %vm104 = vcmp.eq.f32.partialorder %v101, inf
  %v105 = vsel %vm104, %v101, %v103
  %vm106 = vcmp.eq.f32.partialorder %v101, 0.0
  %v107 = vand.u32 %v101, 2147483648
  %v108 = vsel %vm106, %v107, %v105
  %s109 = vtos %v108
  %v110 = vstv %s86
  %v111 = vmul.f32 %v110, %v27
  %v112 = vstv %s109
  %v113 = vmul.f32 %v112, %v28
  %v114 = vadd.f32 %v111, %v113
  %v115 = vrcp.pop %v114
  %v116 = vmul.f32 %v60, %v115
  %v117 = vmul.f32 %v61, %v115
  %v118 = vld [vmem:[%s3] sm:$0xff]
  %v119 = vld [vmem:[%s3 + $0x8] sm:$0xff]
  %121 = vset.pattern.permute.xlu0 0
  %122 = vperm.xlu0 %121, %v118
  %v123 = vpop.permute.xlu0 %122
  %126 = vset.pattern.permute.xlu0 0
  %127 = vperm.xlu0 %126, %v119
  %v128 = vpop.permute.xlu0 %127
  %v130 = vmul.f32 %v116, %v123
  %v131 = vmul.f32 %v117, %v128
  %v132 = vld [vmem:[%s3 + $0x10] sm:$0xff]
  %v133 = vld [vmem:[%s3 + $0x18] sm:$0xff]
  %135 = vset.pattern.permute.xlu0 0
  %136 = vperm.xlu0 %135, %v132
  %v137 = vpop.permute.xlu0 %136
  %140 = vset.pattern.permute.xlu0 0
  %141 = vperm.xlu0 %140, %v133
  %v142 = vpop.permute.xlu0 %141
  %v144 = vadd.f32 %v130, %v137
  %v145 = vadd.f32 %v131, %v142
  %v146 = vld [vmem:[%s1] sm:$0xf]
  %v147 = vld [vmem:[%s1 + $0x4] sm:$0xf]
  %v148 = vld [vmem:[%s1 + $0x8] sm:$0xf]
  %v149 = vld [vmem:[%s1 + $0xc] sm:$0xf]
  %v150 = vld [vmem:[%s1 + $0x10] sm:$0xf]
  %v151 = vld [vmem:[%s1 + $0x14] sm:$0xf]
  %v152 = vpack.c.bf16 %v145, %v144
  %v153 = vld [vmem:[%s3 + $0x60] sm:$0xff]
  %v154 = vld [vmem:[%s3 + $0x68] sm:$0xff]
  %v155 = vld [vmem:[%s3 + $0x70] sm:$0xff]
  %v156 = vld [vmem:[%s3 + $0x78] sm:$0xff]
  %v157 = vld [vmem:[%s3 + $0x80] sm:$0xff]
  %v158 = vld [vmem:[%s3 + $0x88] sm:$0xff]
  %160 = vset.pattern.permute.xlu0 0
  %161 = vperm.xlu0 %160, %v153
  %v162 = vpop.permute.xlu0 %161
  %165 = vset.pattern.permute.xlu0 0
  %166 = vperm.xlu0 %165, %v154
  %v167 = vpop.permute.xlu0 %166
  %170 = vset.pattern.permute.xlu0 0
  %171 = vperm.xlu0 %170, %v155
  %v172 = vpop.permute.xlu0 %171
  %175 = vset.pattern.permute.xlu0 0
  %176 = vperm.xlu0 %175, %v156
  %v177 = vpop.permute.xlu0 %176
  %180 = vset.pattern.permute.xlu0 0
  %181 = vperm.xlu0 %180, %v157
  %v182 = vpop.permute.xlu0 %181
  %185 = vset.pattern.permute.xlu0 0
  %186 = vperm.xlu0 %185, %v158
  %v187 = vpop.permute.xlu0 %186
  %v195 = vunpack.c.l.b16 %v146
  %v196 = vunpack.c.l.b16 %v147
  %v197 = vunpack.c.l.b16 %v148
  %v198 = vunpack.c.l.b16 %v149
  %v199 = vunpack.c.l.b16 %v150
  %v200 = vunpack.c.l.b16 %v151
  %v201 = vpack.c.b16 %v196, %v195
  %v202 = vpack.c.b16 %v198, %v197
  %v203 = vpack.c.b16 %v200, %v199
  %vm204 = vcmask 130048
  %v206 = vsel %vm204, %v201, 0
  %v209 = vsel %vm204, %v202, 0
  %v212 = vsel %vm204, %v203, 0
  %214 = vmatprep.subr.bf16.mxu0 0
  %215 = vmatpush1.bf16.msra.mxu0 0
  %216 = vmatprep.subr.bf16.mxu0 0
  %217 = vmatpush1.bf16.msra.mxu0 0
  %218 = vmatprep.subr.bf16.mxu0 0
  %219 = vmatpush1.bf16.msra.mxu0 0
  %220 = vmatprep.subr.bf16.mxu0 0
  %221 = vmatpush1.bf16.msra.mxu0 0
  %222 = vmatprep.subr.bf16.mxu0 0
  %223 = vmatpush1.bf16.msra.mxu0 0
  %224 = vmatprep.subr.bf16.mxu0 0
  %225 = vmatpush1.bf16.msra.mxu0 0
  %226 = vmatprep.subr.bf16.mxu0 0
  %227 = vmatpush1.bf16.msra.mxu0 0
  %228 = vmatprep.subr.bf16.mxu0 0
  %229 = vmatpush1.bf16.msra.mxu0 %v152
  %230 = vmatprep.subr.bf16.mxu0 0
  %231 = vmatpush2.bf16.msra.mxu0 0
  %232 = vmatprep.subr.bf16.mxu0 0
  %233 = vmatpush2.bf16.msra.mxu0 0
  %234 = vmatprep.subr.bf16.mxu0 0
  %235 = vmatpush2.bf16.msra.mxu0 0
  %236 = vmatprep.subr.bf16.mxu0 0
  %237 = vmatpush2.bf16.msra.mxu0 0
  %238 = vmatprep.subr.bf16.mxu0 0
  %239 = vmatpush2.bf16.msra.mxu0 0
  %240 = vmatprep.subr.bf16.mxu0 0
  %241 = vmatpush2.bf16.msra.mxu0 0
  %242 = vmatprep.subr.bf16.mxu0 0
  %243 = vmatpush2.bf16.msra.mxu0 0
  %244 = vmatprep.subr.bf16.mxu0 0
  %245 = vmatpush2.bf16.msra.mxu0 0
  %246 = vmatprep.mubr.bf16.mxu0 0
  %247 = vmatmul.mubr.bf16.gmra.mxu0 %v206
  %v248 = vpop.f32.mrf.mxu0
  %v249 = vadd.f32 %v162, %v248
  %v250 = vpop.f32.mrf.mxu0
  %v251 = vpop.f32.mrf.mxu0
  %v252 = vadd.f32 %v167, %v251
  %v253 = vpop.f32.mrf.mxu0
  %254 = vmatprep.mubr.bf16.mxu0 0
  %255 = vmatmul.mubr.bf16.gmra.mxu0 %v209
  %v256 = vpop.f32.mrf.mxu0
  %v257 = vadd.f32 %v172, %v256
  %v258 = vpop.f32.mrf.mxu0
  %v259 = vpop.f32.mrf.mxu0
  %v260 = vadd.f32 %v177, %v259
  %v261 = vpop.f32.mrf.mxu0
  %262 = vmatprep.mubr.bf16.mxu0 0
  %263 = vmatmul.mubr.bf16.gmra.mxu0 %v212
  %v264 = vpop.f32.mrf.mxu0
  %v265 = vadd.f32 %v182, %v264
  %v266 = vpop.f32.mrf.mxu0
  %v267 = vpop.f32.mrf.mxu0
  %v268 = vadd.f32 %v187, %v267
  %v269 = vpop.f32.mrf.mxu0
  %270 = vdwg.mxu0
  %v271 = vld [vmem:[%s4] sm:$0xf]
  %v272 = vld [vmem:[%s4 + $0x4] sm:$0xf]
  %v273 = vld [vmem:[%s4 + $0x8] sm:$0xf]
  %v274 = vld [vmem:[%s4 + $0xc] sm:$0xf]
  %v275 = vld [vmem:[%s4 + $0x10] sm:$0xf]
  %v276 = vld [vmem:[%s4 + $0x14] sm:$0xf]
  %v277 = vld [vmem:[%s4 + $0x18] sm:$0xf]
  %v278 = vld [vmem:[%s4 + $0x1c] sm:$0xf]
  %v279 = vld [vmem:[%s4 + $0x20] sm:$0xf]
  %v280 = vld [vmem:[%s4 + $0x24] sm:$0xf]
  %v281 = vld [vmem:[%s4 + $0x28] sm:$0xf]
  %v282 = vld [vmem:[%s4 + $0x2c] sm:$0xf]
  %v283 = vld [vmem:[%s4 + $0x30] sm:$0xf]
  %v284 = vld [vmem:[%s4 + $0x34] sm:$0xf]
  %v285 = vld [vmem:[%s4 + $0x38] sm:$0xf]
  %v286 = vld [vmem:[%s4 + $0x3c] sm:$0xf]
  %v287 = vunpack.c.l.bf16 %v271
  %v288 = vunpack.c.l.bf16 %v272
  %v289 = vunpack.c.l.bf16 %v273
  %v290 = vunpack.c.l.bf16 %v274
  %v291 = vunpack.c.l.bf16 %v275
  %v292 = vunpack.c.l.bf16 %v276
  %v293 = vunpack.c.l.bf16 %v277
  %v294 = vunpack.c.l.bf16 %v278
  %v295 = vunpack.c.l.bf16 %v279
  %v296 = vunpack.c.l.bf16 %v280
  %v297 = vunpack.c.l.bf16 %v281
  %v298 = vunpack.c.l.bf16 %v282
  %v299 = vunpack.c.l.bf16 %v283
  %v300 = vunpack.c.l.bf16 %v284
  %v301 = vunpack.c.l.bf16 %v285
  %v302 = vunpack.c.l.bf16 %v286
  %303 = vxpose.xlu0.b32.start [1/16] %v249, 128
  %304 = vxpose.xlu0.b32.cont [2/16] 0.0, 128
  %305 = vxpose.xlu0.b32.cont [3/16] 0.0, 128
  %306 = vxpose.xlu0.b32.cont [4/16] 0.0, 128
  %307 = vxpose.xlu0.b32.cont [5/16] 0.0, 128
  %308 = vxpose.xlu0.b32.cont [6/16] 0.0, 128
  %309 = vxpose.xlu0.b32.cont [7/16] 0.0, 128
  %310 = vxpose.xlu0.b32.cont [8/16] 0.0, 128
  %311 = vxpose.xlu0.b32.cont [9/16] 0.0, 128
  %312 = vxpose.xlu0.b32.cont [10/16] 0.0, 128
  %313 = vxpose.xlu0.b32.cont [11/16] 0.0, 128
  %314 = vxpose.xlu0.b32.cont [12/16] 0.0, 128
  %315 = vxpose.xlu0.b32.cont [13/16] 0.0, 128
  %316 = vxpose.xlu0.b32.cont [14/16] 0.0, 128
  %317 = vxpose.xlu0.b32.cont [15/16] 0.0, 128
  %318 = vxpose.xlu0.b32.end [16/16] 0.0, 128
  %v319 = vpop.trf.xlu0
  %v320 = vpop.trf.xlu0
  %v321 = vpop.trf.xlu0
  %v322 = vpop.trf.xlu0
  %v323 = vpop.trf.xlu0
  %v324 = vpop.trf.xlu0
  %v325 = vpop.trf.xlu0
  %v326 = vpop.trf.xlu0
  %v327 = vpop.trf.xlu0
  %v328 = vpop.trf.xlu0
  %v329 = vpop.trf.xlu0
  %v330 = vpop.trf.xlu0
  %v331 = vpop.trf.xlu0
  %v332 = vpop.trf.xlu0
  %v333 = vpop.trf.xlu0
  %v334 = vpop.trf.xlu0
  %vm335 = vcmask 64512
  %v337 = vsel %vm335, %v319, 0
  %v340 = vsel %vm335, %v320, 0
  %v343 = vsel %vm335, %v321, 0
  %v346 = vsel %vm335, %v322, 0
  %v349 = vsel %vm335, %v323, 0
  %v352 = vsel %vm335, %v324, 0
  %v355 = vsel %vm335, %v325, 0
  %v358 = vsel %vm335, %v326, 0
  %v361 = vsel %vm335, %v327, 0
  %v364 = vsel %vm335, %v328, 0
  %v367 = vsel %vm335, %v329, 0
  %v370 = vsel %vm335, %v330, 0
  %v373 = vsel %vm335, %v331, 0
  %v376 = vsel %vm335, %v332, 0
  %v379 = vsel %vm335, %v333, 0
  %v382 = vsel %vm335, %v334, 0
  %384 = vmatprep.subr.mxu0 0.0
  %385 = vmatpush1.msra.mxu0 0.0
  %386 = vmatprep.subr.mxu0 0.0
  %387 = vmatpush1.msra.mxu0 0.0
  %388 = vmatprep.subr.mxu0 0.0
  %389 = vmatpush1.msra.mxu0 0.0
  %390 = vmatprep.subr.mxu0 0.0
  %391 = vmatpush1.msra.mxu0 0.0
  %392 = vmatprep.subr.mxu0 0.0
  %393 = vmatpush1.msra.mxu0 0.0
  %394 = vmatprep.subr.mxu0 0.0
  %395 = vmatpush1.msra.mxu0 0.0
  %396 = vmatprep.subr.mxu0 0.0
  %397 = vmatpush1.msra.mxu0 0.0
  %398 = vmatprep.subr.mxu0 0.0
  %399 = vmatpush1.msra.mxu0 0.0
  %400 = vmatprep.subr.mxu0 0.0
  %401 = vmatpush1.msra.mxu0 0.0
  %402 = vmatprep.subr.mxu0 0.0
  %403 = vmatpush1.msra.mxu0 0.0
  %404 = vmatprep.subr.mxu0 0.0
  %405 = vmatpush1.msra.mxu0 0.0
  %406 = vmatprep.subr.mxu0 0.0
  %407 = vmatpush1.msra.mxu0 0.0
  %408 = vmatprep.subr.mxu0 0.0
  %409 = vmatpush1.msra.mxu0 0.0
  %410 = vmatprep.subr.mxu0 0.0
  %411 = vmatpush1.msra.mxu0 0.0
  %412 = vmatprep.subr.mxu0 0.0
  %413 = vmatpush1.msra.mxu0 0.0
  %414 = vmatprep.subr.mxu0 0.0
  %415 = vmatpush1.msra.mxu0 %v257
  %416 = vmatprep.subr.mxu0 0.0
  %417 = vmatpush2.msra.mxu0 0.0
  %418 = vmatprep.subr.mxu0 0.0
  %419 = vmatpush2.msra.mxu0 0.0
  %420 = vmatprep.subr.mxu0 0.0
  %421 = vmatpush2.msra.mxu0 0.0
  %422 = vmatprep.subr.mxu0 0.0
  %423 = vmatpush2.msra.mxu0 0.0
  %424 = vmatprep.subr.mxu0 0.0
  %425 = vmatpush2.msra.mxu0 0.0
  %426 = vmatprep.subr.mxu0 0.0
  %427 = vmatpush2.msra.mxu0 0.0
  %428 = vmatprep.subr.mxu0 0.0
  %429 = vmatpush2.msra.mxu0 0.0
  %430 = vmatprep.subr.mxu0 0.0
  %431 = vmatpush2.msra.mxu0 0.0
  %432 = vmatprep.subr.mxu0 0.0
  %433 = vmatpush2.msra.mxu0 0.0
  %434 = vmatprep.subr.mxu0 0.0
  %435 = vmatpush2.msra.mxu0 0.0
  %436 = vmatprep.subr.mxu0 0.0
  %437 = vmatpush2.msra.mxu0 0.0
  %438 = vmatprep.subr.mxu0 0.0
  %439 = vmatpush2.msra.mxu0 0.0
  %440 = vmatprep.subr.mxu0 0.0
  %441 = vmatpush2.msra.mxu0 0.0
  %442 = vmatprep.subr.mxu0 0.0
  %443 = vmatpush2.msra.mxu0 0.0
  %444 = vmatprep.subr.mxu0 0.0
  %445 = vmatpush2.msra.mxu0 0.0
  %446 = vmatprep.subr.mxu0 0.0
  %447 = vmatpush2.msra.mxu0 0.0
  %448 = vmatprep.mubr.f32.mxu0 0.0
  %449 = vmatmul.mubr.f32.gmra.mxu0 %v337
  %v450 = vpop.f32.mrf.mxu0
  %v451 = vadd.f32 %v287, %v450
  %v452 = vpop.f32.mrf.mxu0
  %453 = vmatprep.mubr.f32.mxu0 0.0
  %454 = vmatmul.mubr.f32.gmra.mxu0 %v340
  %v455 = vpop.f32.mrf.mxu0
  %v456 = vadd.f32 %v288, %v455
  %v457 = vpop.f32.mrf.mxu0
  %458 = vmatprep.mubr.f32.mxu0 0.0
  %459 = vmatmul.mubr.f32.gmra.mxu0 %v343
  %v460 = vpop.f32.mrf.mxu0
  %v461 = vadd.f32 %v289, %v460
  %v462 = vpop.f32.mrf.mxu0
  %463 = vmatprep.mubr.f32.mxu0 0.0
  %464 = vmatmul.mubr.f32.gmra.mxu0 %v346
  %v465 = vpop.f32.mrf.mxu0
  %v466 = vadd.f32 %v290, %v465
  %v467 = vpop.f32.mrf.mxu0
  %468 = vmatprep.mubr.f32.mxu0 0.0
  %469 = vmatmul.mubr.f32.gmra.mxu0 %v349
  %v470 = vpop.f32.mrf.mxu0
  %v471 = vadd.f32 %v291, %v470
  %v472 = vpop.f32.mrf.mxu0
  %473 = vmatprep.mubr.f32.mxu0 0.0
  %474 = vmatmul.mubr.f32.gmra.mxu0 %v352
  %v475 = vpop.f32.mrf.mxu0
  %v476 = vadd.f32 %v292, %v475
  %v477 = vpop.f32.mrf.mxu0
  %478 = vmatprep.mubr.f32.mxu0 0.0
  %479 = vmatmul.mubr.f32.gmra.mxu0 %v355
  %v480 = vpop.f32.mrf.mxu0
  %v481 = vadd.f32 %v293, %v480
  %v482 = vpop.f32.mrf.mxu0
  %483 = vmatprep.mubr.f32.mxu0 0.0
  %484 = vmatmul.mubr.f32.gmra.mxu0 %v358
  %v485 = vpop.f32.mrf.mxu0
  %v486 = vadd.f32 %v294, %v485
  %v487 = vpop.f32.mrf.mxu0
  %488 = vmatprep.mubr.f32.mxu0 0.0
  %489 = vmatmul.mubr.f32.gmra.mxu0 %v361
  %v490 = vpop.f32.mrf.mxu0
  %v491 = vadd.f32 %v295, %v490
  %v492 = vpop.f32.mrf.mxu0
  %493 = vmatprep.mubr.f32.mxu0 0.0
  %494 = vmatmul.mubr.f32.gmra.mxu0 %v364
  %v495 = vpop.f32.mrf.mxu0
  %v496 = vadd.f32 %v296, %v495
  %v497 = vpop.f32.mrf.mxu0
  %498 = vmatprep.mubr.f32.mxu0 0.0
  %499 = vmatmul.mubr.f32.gmra.mxu0 %v367
  %v500 = vpop.f32.mrf.mxu0
  %v501 = vadd.f32 %v297, %v500
  %v502 = vpop.f32.mrf.mxu0
  %503 = vmatprep.mubr.f32.mxu0 0.0
  %504 = vmatmul.mubr.f32.gmra.mxu0 %v370
  %v505 = vpop.f32.mrf.mxu0
  %v506 = vadd.f32 %v298, %v505
  %v507 = vpop.f32.mrf.mxu0
  %508 = vmatprep.mubr.f32.mxu0 0.0
  %509 = vmatmul.mubr.f32.gmra.mxu0 %v373
  %v510 = vpop.f32.mrf.mxu0
  %v511 = vadd.f32 %v299, %v510
  %v512 = vpop.f32.mrf.mxu0
  %513 = vmatprep.mubr.f32.mxu0 0.0
  %514 = vmatmul.mubr.f32.gmra.mxu0 %v376
  %v515 = vpop.f32.mrf.mxu0
  %v516 = vadd.f32 %v300, %v515
  %v517 = vpop.f32.mrf.mxu0
  %518 = vmatprep.mubr.f32.mxu0 0.0
  %519 = vmatmul.mubr.f32.gmra.mxu0 %v379
  %v520 = vpop.f32.mrf.mxu0
  %v521 = vadd.f32 %v301, %v520
  %v522 = vpop.f32.mrf.mxu0
  %523 = vmatprep.mubr.f32.mxu0 0.0
  %524 = vmatmul.mubr.f32.gmra.mxu0 %v382
  %v525 = vpop.f32.mrf.mxu0
  %v526 = vadd.f32 %v302, %v525
  %v527 = vpop.f32.mrf.mxu0
  %528 = vdwg.mxu0
  %529 = vmax.xlane.f32.xlu0 %v451
  %v530 = vpop.xlane.xlu0 %529
  %531 = vmax.xlane.f32.xlu0 %v456
  %v532 = vpop.xlane.xlu0 %531
  %533 = vmax.xlane.f32.xlu0 %v461
  %v534 = vpop.xlane.xlu0 %533
  %535 = vmax.xlane.f32.xlu0 %v466
  %v536 = vpop.xlane.xlu0 %535
  %537 = vmax.xlane.f32.xlu0 %v471
  %v538 = vpop.xlane.xlu0 %537
  %539 = vmax.xlane.f32.xlu0 %v476
  %v540 = vpop.xlane.xlu0 %539
  %541 = vmax.xlane.f32.xlu0 %v481
  %v542 = vpop.xlane.xlu0 %541
  %543 = vmax.xlane.f32.xlu0 %v486
  %v544 = vpop.xlane.xlu0 %543
  %545 = vmax.xlane.f32.xlu0 %v491
  %v546 = vpop.xlane.xlu0 %545
  %547 = vmax.xlane.f32.xlu0 %v496
  %v548 = vpop.xlane.xlu0 %547
  %549 = vmax.xlane.f32.xlu0 %v501
  %v550 = vpop.xlane.xlu0 %549
  %551 = vmax.xlane.f32.xlu0 %v506
  %v552 = vpop.xlane.xlu0 %551
  %553 = vmax.xlane.f32.xlu0 %v511
  %v554 = vpop.xlane.xlu0 %553
  %555 = vmax.xlane.f32.xlu0 %v516
  %v556 = vpop.xlane.xlu0 %555
  %557 = vmax.xlane.f32.xlu0 %v521
  %v558 = vpop.xlane.xlu0 %557
  %559 = vmax.xlane.f32.xlu0 %v526
  %v560 = vpop.xlane.xlu0 %559
  %v561 = vsub.f32 %v451, %v530
  %v562 = vsub.f32 %v456, %v532
  %v563 = vsub.f32 %v461, %v534
  %v564 = vsub.f32 %v466, %v536
  %v565 = vsub.f32 %v471, %v538
  %v566 = vsub.f32 %v476, %v540
  %v567 = vsub.f32 %v481, %v542
  %v568 = vsub.f32 %v486, %v544
  %v569 = vsub.f32 %v491, %v546
  %v570 = vsub.f32 %v496, %v548
  %v571 = vsub.f32 %v501, %v550
  %v572 = vsub.f32 %v506, %v552
  %v573 = vsub.f32 %v511, %v554
  %v574 = vsub.f32 %v516, %v556
  %v575 = vsub.f32 %v521, %v558
  %v576 = vsub.f32 %v526, %v560
  %v577 = vmul.f32 %v561, 1.442695
  %v578 = vpow.pop %v577
  %v579 = vmul.f32 %v562, 1.442695
  %v580 = vpow.pop %v579
  %v581 = vmul.f32 %v563, 1.442695
  %v582 = vpow.pop %v581
  %v583 = vmul.f32 %v564, 1.442695
  %v584 = vpow.pop %v583
  %v585 = vmul.f32 %v565, 1.442695
  %v586 = vpow.pop %v585
  %v587 = vmul.f32 %v566, 1.442695
  %v588 = vpow.pop %v587
  %v589 = vmul.f32 %v567, 1.442695
  %v590 = vpow.pop %v589
  %v591 = vmul.f32 %v568, 1.442695
  %v592 = vpow.pop %v591
  %v593 = vmul.f32 %v569, 1.442695
  %v594 = vpow.pop %v593
  %v595 = vmul.f32 %v570, 1.442695
  %v596 = vpow.pop %v595
  %v597 = vmul.f32 %v571, 1.442695
  %v598 = vpow.pop %v597
  %v599 = vmul.f32 %v572, 1.442695
  %v600 = vpow.pop %v599
  %v601 = vmul.f32 %v573, 1.442695
  %v602 = vpow.pop %v601
  %v603 = vmul.f32 %v574, 1.442695
  %v604 = vpow.pop %v603
  %v605 = vmul.f32 %v575, 1.442695
  %v606 = vpow.pop %v605
  %v607 = vmul.f32 %v576, 1.442695
  %v608 = vpow.pop %v607
  %609 = vadd.xlane.f32.xlu0 %v578
  %v610 = vpop.xlane.xlu0 %609
  %611 = vadd.xlane.f32.xlu0 %v580
  %v612 = vpop.xlane.xlu0 %611
  %613 = vadd.xlane.f32.xlu0 %v582
  %v614 = vpop.xlane.xlu0 %613
  %615 = vadd.xlane.f32.xlu0 %v584
  %v616 = vpop.xlane.xlu0 %615
  %617 = vadd.xlane.f32.xlu0 %v586
  %v618 = vpop.xlane.xlu0 %617
  %619 = vadd.xlane.f32.xlu0 %v588
  %v620 = vpop.xlane.xlu0 %619
  %621 = vadd.xlane.f32.xlu0 %v590
  %v622 = vpop.xlane.xlu0 %621
  %623 = vadd.xlane.f32.xlu0 %v592
  %v624 = vpop.xlane.xlu0 %623
  %625 = vadd.xlane.f32.xlu0 %v594
  %v626 = vpop.xlane.xlu0 %625
  %627 = vadd.xlane.f32.xlu0 %v596
  %v628 = vpop.xlane.xlu0 %627
  %629 = vadd.xlane.f32.xlu0 %v598
  %v630 = vpop.xlane.xlu0 %629
  %631 = vadd.xlane.f32.xlu0 %v600
  %v632 = vpop.xlane.xlu0 %631
  %633 = vadd.xlane.f32.xlu0 %v602
  %v634 = vpop.xlane.xlu0 %633
  %635 = vadd.xlane.f32.xlu0 %v604
  %v636 = vpop.xlane.xlu0 %635
  %637 = vadd.xlane.f32.xlu0 %v606
  %v638 = vpop.xlane.xlu0 %637
  %639 = vadd.xlane.f32.xlu0 %v608
  %v640 = vpop.xlane.xlu0 %639
  %v641 = vrcp.pop %v610
  %v642 = vrcp.pop %v612
  %v643 = vrcp.pop %v614
  %v644 = vrcp.pop %v616
  %v645 = vrcp.pop %v618
  %v646 = vrcp.pop %v620
  %v647 = vrcp.pop %v622
  %v648 = vrcp.pop %v624
  %v649 = vrcp.pop %v626
  %v650 = vrcp.pop %v628
  %v651 = vrcp.pop %v630
  %v652 = vrcp.pop %v632
  %v653 = vrcp.pop %v634
  %v654 = vrcp.pop %v636
  %v655 = vrcp.pop %v638
  %v656 = vrcp.pop %v640
  %v657 = vmul.f32 %v578, %v641
  %v658 = vmul.f32 %v580, %v642
  %v659 = vmul.f32 %v582, %v643
  %v660 = vmul.f32 %v584, %v644
  %v661 = vmul.f32 %v586, %v645
  %v662 = vmul.f32 %v588, %v646
  %v663 = vmul.f32 %v590, %v647
  %v664 = vmul.f32 %v592, %v648
  %v665 = vmul.f32 %v594, %v649
  %v666 = vmul.f32 %v596, %v650
  %v667 = vmul.f32 %v598, %v651
  %v668 = vmul.f32 %v600, %v652
  %v669 = vmul.f32 %v602, %v653
  %v670 = vmul.f32 %v604, %v654
  %v671 = vmul.f32 %v606, %v655
  %v672 = vmul.f32 %v608, %v656
  %673 = vmatprep.subr.mxu0 0.0
  %674 = vmatpush1.xpose.msra.mxu0 %v672
  %675 = vmatprep.subr.mxu0 0.0
  %676 = vmatpush1.xpose.msra.mxu0 %v671
  %677 = vmatprep.subr.mxu0 0.0
  %678 = vmatpush1.xpose.msra.mxu0 %v670
  %679 = vmatprep.subr.mxu0 0.0
  %680 = vmatpush1.xpose.msra.mxu0 %v669
  %681 = vmatprep.subr.mxu0 0.0
  %682 = vmatpush1.xpose.msra.mxu0 %v668
  %683 = vmatprep.subr.mxu0 0.0
  %684 = vmatpush1.xpose.msra.mxu0 %v667
  %685 = vmatprep.subr.mxu0 0.0
  %686 = vmatpush1.xpose.msra.mxu0 %v666
  %687 = vmatprep.subr.mxu0 0.0
  %688 = vmatpush1.xpose.msra.mxu0 %v665
  %689 = vmatprep.subr.mxu0 0.0
  %690 = vmatpush1.xpose.msra.mxu0 %v664
  %691 = vmatprep.subr.mxu0 0.0
  %692 = vmatpush1.xpose.msra.mxu0 %v663
  %693 = vmatprep.subr.mxu0 0.0
  %694 = vmatpush1.xpose.msra.mxu0 %v662
  %695 = vmatprep.subr.mxu0 0.0
  %696 = vmatpush1.xpose.msra.mxu0 %v661
  %697 = vmatprep.subr.mxu0 0.0
  %698 = vmatpush1.xpose.msra.mxu0 %v660
  %699 = vmatprep.subr.mxu0 0.0
  %700 = vmatpush1.xpose.msra.mxu0 %v659
  %701 = vmatprep.subr.mxu0 0.0
  %702 = vmatpush1.xpose.msra.mxu0 %v658
  %703 = vmatprep.subr.mxu0 0.0
  %704 = vmatpush1.xpose.msra.mxu0 %v657
  %705 = vmatprep.subr.mxu0 0.0
  %706 = vmatpush2.xpose.msra.mxu0 0.0
  %707 = vmatprep.subr.mxu0 0.0
  %708 = vmatpush2.xpose.msra.mxu0 0.0
  %709 = vmatprep.subr.mxu0 0.0
  %710 = vmatpush2.xpose.msra.mxu0 0.0
  %711 = vmatprep.subr.mxu0 0.0
  %712 = vmatpush2.xpose.msra.mxu0 0.0
  %713 = vmatprep.subr.mxu0 0.0
  %714 = vmatpush2.xpose.msra.mxu0 0.0
  %715 = vmatprep.subr.mxu0 0.0
  %716 = vmatpush2.xpose.msra.mxu0 0.0
  %717 = vmatprep.subr.mxu0 0.0
  %718 = vmatpush2.xpose.msra.mxu0 0.0
  %719 = vmatprep.subr.mxu0 0.0
  %720 = vmatpush2.xpose.msra.mxu0 0.0
  %721 = vmatprep.subr.mxu0 0.0
  %722 = vmatpush2.xpose.msra.mxu0 0.0
  %723 = vmatprep.subr.mxu0 0.0
  %724 = vmatpush2.xpose.msra.mxu0 0.0
  %725 = vmatprep.subr.mxu0 0.0
  %726 = vmatpush2.xpose.msra.mxu0 0.0
  %727 = vmatprep.subr.mxu0 0.0
  %728 = vmatpush2.xpose.msra.mxu0 0.0
  %729 = vmatprep.subr.mxu0 0.0
  %730 = vmatpush2.xpose.msra.mxu0 0.0
  %731 = vmatprep.subr.mxu0 0.0
  %732 = vmatpush2.xpose.msra.mxu0 0.0
  %733 = vmatprep.subr.mxu0 0.0
  %734 = vmatpush2.xpose.msra.mxu0 0.0
  %735 = vmatprep.subr.mxu0 0.0
  %736 = vmatpush2.xpose.msra.mxu0 0.0
  %737 = vmatprep.mubr.f32.mxu0 0.0
  %738 = vmatmul.mubr.f32.gmra.mxu0 %v265
  %v739 = vpop.f32.mrf.mxu0
  %v740 = vadd.f32 0.0, %v739
  %v741 = vpop.f32.mrf.mxu0
  %742 = vdwg.mxu0
  %743 = vst [vmem:[#allocation2] sm:$0xff] %v740
  %s744 = scalar_lea.vmem %s4, 64
  %v745 = vld [vmem:[%s744] sm:$0xf]
  %v746 = vld [vmem:[%s744 + $0x4] sm:$0xf]
  %v747 = vld [vmem:[%s744 + $0x8] sm:$0xf]
  %v748 = vld [vmem:[%s744 + $0xc] sm:$0xf]
  %v749 = vld [vmem:[%s744 + $0x10] sm:$0xf]
  %v750 = vld [vmem:[%s744 + $0x14] sm:$0xf]
  %v751 = vld [vmem:[%s744 + $0x18] sm:$0xf]
  %v752 = vld [vmem:[%s744 + $0x1c] sm:$0xf]
  %v753 = vld [vmem:[%s744 + $0x20] sm:$0xf]
  %v754 = vld [vmem:[%s744 + $0x24] sm:$0xf]
  %v755 = vld [vmem:[%s744 + $0x28] sm:$0xf]
  %v756 = vld [vmem:[%s744 + $0x2c] sm:$0xf]
  %v757 = vld [vmem:[%s744 + $0x30] sm:$0xf]
  %v758 = vld [vmem:[%s744 + $0x34] sm:$0xf]
  %v759 = vld [vmem:[%s744 + $0x38] sm:$0xf]
  %v760 = vld [vmem:[%s744 + $0x3c] sm:$0xf]
  %v761 = vunpack.c.l.bf16 %v745
  %v762 = vunpack.c.l.bf16 %v746
  %v763 = vunpack.c.l.bf16 %v747
  %v764 = vunpack.c.l.bf16 %v748
  %v765 = vunpack.c.l.bf16 %v749
  %v766 = vunpack.c.l.bf16 %v750
  %v767 = vunpack.c.l.bf16 %v751
  %v768 = vunpack.c.l.bf16 %v752
  %v769 = vunpack.c.l.bf16 %v753
  %v770 = vunpack.c.l.bf16 %v754
  %v771 = vunpack.c.l.bf16 %v755
  %v772 = vunpack.c.l.bf16 %v756
  %v773 = vunpack.c.l.bf16 %v757
  %v774 = vunpack.c.l.bf16 %v758
  %v775 = vunpack.c.l.bf16 %v759
  %v776 = vunpack.c.l.bf16 %v760
  %777 = vxpose.xlu0.b32.start [1/16] %v252, 128
  %778 = vxpose.xlu0.b32.cont [2/16] 0.0, 128
  %779 = vxpose.xlu0.b32.cont [3/16] 0.0, 128
  %780 = vxpose.xlu0.b32.cont [4/16] 0.0, 128
  %781 = vxpose.xlu0.b32.cont [5/16] 0.0, 128
  %782 = vxpose.xlu0.b32.cont [6/16] 0.0, 128
  %783 = vxpose.xlu0.b32.cont [7/16] 0.0, 128
  %784 = vxpose.xlu0.b32.cont [8/16] 0.0, 128
  %785 = vxpose.xlu0.b32.cont [9/16] 0.0, 128
  %786 = vxpose.xlu0.b32.cont [10/16] 0.0, 128
  %787 = vxpose.xlu0.b32.cont [11/16] 0.0, 128
  %788 = vxpose.xlu0.b32.cont [12/16] 0.0, 128
  %789 = vxpose.xlu0.b32.cont [13/16] 0.0, 128
  %790 = vxpose.xlu0.b32.cont [14/16] 0.0, 128
  %791 = vxpose.xlu0.b32.cont [15/16] 0.0, 128
  %792 = vxpose.xlu0.b32.end [16/16] 0.0, 128
  %v793 = vpop.trf.xlu0
  %v794 = vpop.trf.xlu0
  %v795 = vpop.trf.xlu0
  %v796 = vpop.trf.xlu0
  %v797 = vpop.trf.xlu0
  %v798 = vpop.trf.xlu0
  %v799 = vpop.trf.xlu0
  %v800 = vpop.trf.xlu0
  %v801 = vpop.trf.xlu0
  %v802 = vpop.trf.xlu0
  %v803 = vpop.trf.xlu0
  %v804 = vpop.trf.xlu0
  %v805 = vpop.trf.xlu0
  %v806 = vpop.trf.xlu0
  %v807 = vpop.trf.xlu0
  %v808 = vpop.trf.xlu0
  %v810 = vsel %vm335, %v793, 0
  %v813 = vsel %vm335, %v794, 0
  %v816 = vsel %vm335, %v795, 0
  %v819 = vsel %vm335, %v796, 0
  %v822 = vsel %vm335, %v797, 0
  %v825 = vsel %vm335, %v798, 0
  %v828 = vsel %vm335, %v799, 0
  %v831 = vsel %vm335, %v800, 0
  %v834 = vsel %vm335, %v801, 0
  %v837 = vsel %vm335, %v802, 0
  %v840 = vsel %vm335, %v803, 0
  %v843 = vsel %vm335, %v804, 0
  %v846 = vsel %vm335, %v805, 0
  %v849 = vsel %vm335, %v806, 0
  %v852 = vsel %vm335, %v807, 0
  %v855 = vsel %vm335, %v808, 0
  %857 = vmatprep.subr.mxu0 0.0
  %858 = vmatpush1.msra.mxu0 0.0
  %859 = vmatprep.subr.mxu0 0.0
  %860 = vmatpush1.msra.mxu0 0.0
  %861 = vmatprep.subr.mxu0 0.0
  %862 = vmatpush1.msra.mxu0 0.0
  %863 = vmatprep.subr.mxu0 0.0
  %864 = vmatpush1.msra.mxu0 0.0
  %865 = vmatprep.subr.mxu0 0.0
  %866 = vmatpush1.msra.mxu0 0.0
  %867 = vmatprep.subr.mxu0 0.0
  %868 = vmatpush1.msra.mxu0 0.0
  %869 = vmatprep.subr.mxu0 0.0
  %870 = vmatpush1.msra.mxu0 0.0
  %871 = vmatprep.subr.mxu0 0.0
  %872 = vmatpush1.msra.mxu0 0.0
  %873 = vmatprep.subr.mxu0 0.0
  %874 = vmatpush1.msra.mxu0 0.0
  %875 = vmatprep.subr.mxu0 0.0
  %876 = vmatpush1.msra.mxu0 0.0
  %877 = vmatprep.subr.mxu0 0.0
  %878 = vmatpush1.msra.mxu0 0.0
  %879 = vmatprep.subr.mxu0 0.0
  %880 = vmatpush1.msra.mxu0 0.0
  %881 = vmatprep.subr.mxu0 0.0
  %882 = vmatpush1.msra.mxu0 0.0
  %883 = vmatprep.subr.mxu0 0.0
  %884 = vmatpush1.msra.mxu0 0.0
  %885 = vmatprep.subr.mxu0 0.0
  %886 = vmatpush1.msra.mxu0 0.0
  %887 = vmatprep.subr.mxu0 0.0
  %888 = vmatpush1.msra.mxu0 %v260
  %889 = vmatprep.subr.mxu0 0.0
  %890 = vmatpush2.msra.mxu0 0.0
  %891 = vmatprep.subr.mxu0 0.0
  %892 = vmatpush2.msra.mxu0 0.0
  %893 = vmatprep.subr.mxu0 0.0
  %894 = vmatpush2.msra.mxu0 0.0
  %895 = vmatprep.subr.mxu0 0.0
  %896 = vmatpush2.msra.mxu0 0.0
  %897 = vmatprep.subr.mxu0 0.0
  %898 = vmatpush2.msra.mxu0 0.0
  %899 = vmatprep.subr.mxu0 0.0
  %900 = vmatpush2.msra.mxu0 0.0
  %901 = vmatprep.subr.mxu0 0.0
  %902 = vmatpush2.msra.mxu0 0.0
  %903 = vmatprep.subr.mxu0 0.0
  %904 = vmatpush2.msra.mxu0 0.0
  %905 = vmatprep.subr.mxu0 0.0
  %906 = vmatpush2.msra.mxu0 0.0
  %907 = vmatprep.subr.mxu0 0.0
  %908 = vmatpush2.msra.mxu0 0.0
  %909 = vmatprep.subr.mxu0 0.0
  %910 = vmatpush2.msra.mxu0 0.0
  %911 = vmatprep.subr.mxu0 0.0
  %912 = vmatpush2.msra.mxu0 0.0
  %913 = vmatprep.subr.mxu0 0.0
  %914 = vmatpush2.msra.mxu0 0.0
  %915 = vmatprep.subr.mxu0 0.0
  %916 = vmatpush2.msra.mxu0 0.0
  %917 = vmatprep.subr.mxu0 0.0
  %918 = vmatpush2.msra.mxu0 0.0
  %919 = vmatprep.subr.mxu0 0.0
  %920 = vmatpush2.msra.mxu0 0.0
  %921 = vmatprep.mubr.f32.mxu0 0.0
  %922 = vmatmul.mubr.f32.gmra.mxu0 %v810
  %v923 = vpop.f32.mrf.mxu0
  %v924 = vadd.f32 %v761, %v923
  %v925 = vpop.f32.mrf.mxu0
  %926 = vmatprep.mubr.f32.mxu0 0.0
  %927 = vmatmul.mubr.f32.gmra.mxu0 %v813
  %v928 = vpop.f32.mrf.mxu0
  %v929 = vadd.f32 %v762, %v928
  %v930 = vpop.f32.mrf.mxu0
  %931 = vmatprep.mubr.f32.mxu0 0.0
  %932 = vmatmul.mubr.f32.gmra.mxu0 %v816
  %v933 = vpop.f32.mrf.mxu0
  %v934 = vadd.f32 %v763, %v933
  %v935 = vpop.f32.mrf.mxu0
  %936 = vmatprep.mubr.f32.mxu0 0.0
  %937 = vmatmul.mubr.f32.gmra.mxu0 %v819
  %v938 = vpop.f32.mrf.mxu0
  %v939 = vadd.f32 %v764, %v938
  %v940 = vpop.f32.mrf.mxu0
  %941 = vmatprep.mubr.f32.mxu0 0.0
  %942 = vmatmul.mubr.f32.gmra.mxu0 %v822
  %v943 = vpop.f32.mrf.mxu0
  %v944 = vadd.f32 %v765, %v943
  %v945 = vpop.f32.mrf.mxu0
  %946 = vmatprep.mubr.f32.mxu0 0.0
  %947 = vmatmul.mubr.f32.gmra.mxu0 %v825
  %v948 = vpop.f32.mrf.mxu0
  %v949 = vadd.f32 %v766, %v948
  %v950 = vpop.f32.mrf.mxu0
  %951 = vmatprep.mubr.f32.mxu0 0.0
  %952 = vmatmul.mubr.f32.gmra.mxu0 %v828
  %v953 = vpop.f32.mrf.mxu0
  %v954 = vadd.f32 %v767, %v953
  %v955 = vpop.f32.mrf.mxu0
  %956 = vmatprep.mubr.f32.mxu0 0.0
  %957 = vmatmul.mubr.f32.gmra.mxu0 %v831
  %v958 = vpop.f32.mrf.mxu0
  %v959 = vadd.f32 %v768, %v958
  %v960 = vpop.f32.mrf.mxu0
  %961 = vmatprep.mubr.f32.mxu0 0.0
  %962 = vmatmul.mubr.f32.gmra.mxu0 %v834
  %v963 = vpop.f32.mrf.mxu0
  %v964 = vadd.f32 %v769, %v963
  %v965 = vpop.f32.mrf.mxu0
  %966 = vmatprep.mubr.f32.mxu0 0.0
  %967 = vmatmul.mubr.f32.gmra.mxu0 %v837
  %v968 = vpop.f32.mrf.mxu0
  %v969 = vadd.f32 %v770, %v968
  %v970 = vpop.f32.mrf.mxu0
  %971 = vmatprep.mubr.f32.mxu0 0.0
  %972 = vmatmul.mubr.f32.gmra.mxu0 %v840
  %v973 = vpop.f32.mrf.mxu0
  %v974 = vadd.f32 %v771, %v973
  %v975 = vpop.f32.mrf.mxu0
  %976 = vmatprep.mubr.f32.mxu0 0.0
  %977 = vmatmul.mubr.f32.gmra.mxu0 %v843
  %v978 = vpop.f32.mrf.mxu0
  %v979 = vadd.f32 %v772, %v978
  %v980 = vpop.f32.mrf.mxu0
  %981 = vmatprep.mubr.f32.mxu0 0.0
  %982 = vmatmul.mubr.f32.gmra.mxu0 %v846
  %v983 = vpop.f32.mrf.mxu0
  %v984 = vadd.f32 %v773, %v983
  %v985 = vpop.f32.mrf.mxu0
  %986 = vmatprep.mubr.f32.mxu0 0.0
  %987 = vmatmul.mubr.f32.gmra.mxu0 %v849
  %v988 = vpop.f32.mrf.mxu0
  %v989 = vadd.f32 %v774, %v988
  %v990 = vpop.f32.mrf.mxu0
  %991 = vmatprep.mubr.f32.mxu0 0.0
  %992 = vmatmul.mubr.f32.gmra.mxu0 %v852
  %v993 = vpop.f32.mrf.mxu0
  %v994 = vadd.f32 %v775, %v993
  %v995 = vpop.f32.mrf.mxu0
  %996 = vmatprep.mubr.f32.mxu0 0.0
  %997 = vmatmul.mubr.f32.gmra.mxu0 %v855
  %v998 = vpop.f32.mrf.mxu0
  %v999 = vadd.f32 %v776, %v998
  %v1000 = vpop.f32.mrf.mxu0
  %1001 = vdwg.mxu0
  %1002 = vmax.xlane.f32.xlu0 %v924
  %v1003 = vpop.xlane.xlu0 %1002
  %1004 = vmax.xlane.f32.xlu0 %v929
  %v1005 = vpop.xlane.xlu0 %1004
  %1006 = vmax.xlane.f32.xlu0 %v934
  %v1007 = vpop.xlane.xlu0 %1006
  %1008 = vmax.xlane.f32.xlu0 %v939
  %v1009 = vpop.xlane.xlu0 %1008
  %1010 = vmax.xlane.f32.xlu0 %v944
  %v1011 = vpop.xlane.xlu0 %1010
  %1012 = vmax.xlane.f32.xlu0 %v949
  %v1013 = vpop.xlane.xlu0 %1012
  %1014 = vmax.xlane.f32.xlu0 %v954
  %v1015 = vpop.xlane.xlu0 %1014
  %1016 = vmax.xlane.f32.xlu0 %v959
  %v1017 = vpop.xlane.xlu0 %1016
  %1018 = vmax.xlane.f32.xlu0 %v964
  %v1019 = vpop.xlane.xlu0 %1018
  %1020 = vmax.xlane.f32.xlu0 %v969
  %v1021 = vpop.xlane.xlu0 %1020
  %1022 = vmax.xlane.f32.xlu0 %v974
  %v1023 = vpop.xlane.xlu0 %1022
  %1024 = vmax.xlane.f32.xlu0 %v979
  %v1025 = vpop.xlane.xlu0 %1024
  %1026 = vmax.xlane.f32.xlu0 %v984
  %v1027 = vpop.xlane.xlu0 %1026
  %1028 = vmax.xlane.f32.xlu0 %v989
  %v1029 = vpop.xlane.xlu0 %1028
  %1030 = vmax.xlane.f32.xlu0 %v994
  %v1031 = vpop.xlane.xlu0 %1030
  %1032 = vmax.xlane.f32.xlu0 %v999
  %v1033 = vpop.xlane.xlu0 %1032
  %v1034 = vsub.f32 %v924, %v1003
  %v1035 = vsub.f32 %v929, %v1005
  %v1036 = vsub.f32 %v934, %v1007
  %v1037 = vsub.f32 %v939, %v1009
  %v1038 = vsub.f32 %v944, %v1011
  %v1039 = vsub.f32 %v949, %v1013
  %v1040 = vsub.f32 %v954, %v1015
  %v1041 = vsub.f32 %v959, %v1017
  %v1042 = vsub.f32 %v964, %v1019
  %v1043 = vsub.f32 %v969, %v1021
  %v1044 = vsub.f32 %v974, %v1023
  %v1045 = vsub.f32 %v979, %v1025
  %v1046 = vsub.f32 %v984, %v1027
  %v1047 = vsub.f32 %v989, %v1029
  %v1048 = vsub.f32 %v994, %v1031
  %v1049 = vsub.f32 %v999, %v1033
  %v1050 = vmul.f32 %v1034, 1.442695
  %v1051 = vpow.pop %v1050
  %v1052 = vmul.f32 %v1035, 1.442695
  %v1053 = vpow.pop %v1052
  %v1054 = vmul.f32 %v1036, 1.442695
  %v1055 = vpow.pop %v1054
  %v1056 = vmul.f32 %v1037, 1.442695
  %v1057 = vpow.pop %v1056
  %v1058 = vmul.f32 %v1038, 1.442695
  %v1059 = vpow.pop %v1058
  %v1060 = vmul.f32 %v1039, 1.442695
  %v1061 = vpow.pop %v1060
  %v1062 = vmul.f32 %v1040, 1.442695
  %v1063 = vpow.pop %v1062
  %v1064 = vmul.f32 %v1041, 1.442695
  %v1065 = vpow.pop %v1064
  %v1066 = vmul.f32 %v1042, 1.442695
  %v1067 = vpow.pop %v1066
  %v1068 = vmul.f32 %v1043, 1.442695
  %v1069 = vpow.pop %v1068
  %v1070 = vmul.f32 %v1044, 1.442695
  %v1071 = vpow.pop %v1070
  %v1072 = vmul.f32 %v1045, 1.442695
  %v1073 = vpow.pop %v1072
  %v1074 = vmul.f32 %v1046, 1.442695
  %v1075 = vpow.pop %v1074
  %v1076 = vmul.f32 %v1047, 1.442695
  %v1077 = vpow.pop %v1076
  %v1078 = vmul.f32 %v1048, 1.442695
  %v1079 = vpow.pop %v1078
  %v1080 = vmul.f32 %v1049, 1.442695
  %v1081 = vpow.pop %v1080
  %1082 = vadd.xlane.f32.xlu0 %v1051
  %v1083 = vpop.xlane.xlu0 %1082
  %1084 = vadd.xlane.f32.xlu0 %v1053
  %v1085 = vpop.xlane.xlu0 %1084
  %1086 = vadd.xlane.f32.xlu0 %v1055
  %v1087 = vpop.xlane.xlu0 %1086
  %1088 = vadd.xlane.f32.xlu0 %v1057
  %v1089 = vpop.xlane.xlu0 %1088
  %1090 = vadd.xlane.f32.xlu0 %v1059
  %v1091 = vpop.xlane.xlu0 %1090
  %1092 = vadd.xlane.f32.xlu0 %v1061
  %v1093 = vpop.xlane.xlu0 %1092
  %1094 = vadd.xlane.f32.xlu0 %v1063
  %v1095 = vpop.xlane.xlu0 %1094
  %1096 = vadd.xlane.f32.xlu0 %v1065
  %v1097 = vpop.xlane.xlu0 %1096
  %1098 = vadd.xlane.f32.xlu0 %v1067
  %v1099 = vpop.xlane.xlu0 %1098
  %1100 = vadd.xlane.f32.xlu0 %v1069
  %v1101 = vpop.xlane.xlu0 %1100
  %1102 = vadd.xlane.f32.xlu0 %v1071
  %v1103 = vpop.xlane.xlu0 %1102
  %1104 = vadd.xlane.f32.xlu0 %v1073
  %v1105 = vpop.xlane.xlu0 %1104
  %1106 = vadd.xlane.f32.xlu0 %v1075
  %v1107 = vpop.xlane.xlu0 %1106
  %1108 = vadd.xlane.f32.xlu0 %v1077
  %v1109 = vpop.xlane.xlu0 %1108
  %1110 = vadd.xlane.f32.xlu0 %v1079
  %v1111 = vpop.xlane.xlu0 %1110
  %1112 = vadd.xlane.f32.xlu0 %v1081
  %v1113 = vpop.xlane.xlu0 %1112
  %v1114 = vrcp.pop %v1083
  %v1115 = vrcp.pop %v1085
  %v1116 = vrcp.pop %v1087
  %v1117 = vrcp.pop %v1089
  %v1118 = vrcp.pop %v1091
  %v1119 = vrcp.pop %v1093
  %v1120 = vrcp.pop %v1095
  %v1121 = vrcp.pop %v1097
  %v1122 = vrcp.pop %v1099
  %v1123 = vrcp.pop %v1101
  %v1124 = vrcp.pop %v1103
  %v1125 = vrcp.pop %v1105
  %v1126 = vrcp.pop %v1107
  %v1127 = vrcp.pop %v1109
  %v1128 = vrcp.pop %v1111
  %v1129 = vrcp.pop %v1113
  %v1130 = vmul.f32 %v1051, %v1114
  %v1131 = vmul.f32 %v1053, %v1115
  %v1132 = vmul.f32 %v1055, %v1116
  %v1133 = vmul.f32 %v1057, %v1117
  %v1134 = vmul.f32 %v1059, %v1118
  %v1135 = vmul.f32 %v1061, %v1119
  %v1136 = vmul.f32 %v1063, %v1120
  %v1137 = vmul.f32 %v1065, %v1121
  %v1138 = vmul.f32 %v1067, %v1122
  %v1139 = vmul.f32 %v1069, %v1123
  %v1140 = vmul.f32 %v1071, %v1124
  %v1141 = vmul.f32 %v1073, %v1125
  %v1142 = vmul.f32 %v1075, %v1126
  %v1143 = vmul.f32 %v1077, %v1127
  %v1144 = vmul.f32 %v1079, %v1128
  %v1145 = vmul.f32 %v1081, %v1129
  %1146 = vmatprep.subr.mxu0 0.0
  %1147 = vmatpush1.xpose.msra.mxu0 %v1145
  %1148 = vmatprep.subr.mxu0 0.0
  %1149 = vmatpush1.xpose.msra.mxu0 %v1144
  %1150 = vmatprep.subr.mxu0 0.0
  %1151 = vmatpush1.xpose.msra.mxu0 %v1143
  %1152 = vmatprep.subr.mxu0 0.0
  %1153 = vmatpush1.xpose.msra.mxu0 %v1142
  %1154 = vmatprep.subr.mxu0 0.0
  %1155 = vmatpush1.xpose.msra.mxu0 %v1141
  %1156 = vmatprep.subr.mxu0 0.0
  %1157 = vmatpush1.xpose.msra.mxu0 %v1140
  %1158 = vmatprep.subr.mxu0 0.0
  %1159 = vmatpush1.xpose.msra.mxu0 %v1139
  %1160 = vmatprep.subr.mxu0 0.0
  %1161 = vmatpush1.xpose.msra.mxu0 %v1138
  %1162 = vmatprep.subr.mxu0 0.0
  %1163 = vmatpush1.xpose.msra.mxu0 %v1137
  %1164 = vmatprep.subr.mxu0 0.0
  %1165 = vmatpush1.xpose.msra.mxu0 %v1136
  %1166 = vmatprep.subr.mxu0 0.0
  %1167 = vmatpush1.xpose.msra.mxu0 %v1135
  %1168 = vmatprep.subr.mxu0 0.0
  %1169 = vmatpush1.xpose.msra.mxu0 %v1134
  %1170 = vmatprep.subr.mxu0 0.0
  %1171 = vmatpush1.xpose.msra.mxu0 %v1133
  %1172 = vmatprep.subr.mxu0 0.0
  %1173 = vmatpush1.xpose.msra.mxu0 %v1132
  %1174 = vmatprep.subr.mxu0 0.0
  %1175 = vmatpush1.xpose.msra.mxu0 %v1131
  %1176 = vmatprep.subr.mxu0 0.0
  %1177 = vmatpush1.xpose.msra.mxu0 %v1130
  %1178 = vmatprep.subr.mxu0 0.0
  %1179 = vmatpush2.xpose.msra.mxu0 0.0
  %1180 = vmatprep.subr.mxu0 0.0
  %1181 = vmatpush2.xpose.msra.mxu0 0.0
  %1182 = vmatprep.subr.mxu0 0.0
  %1183 = vmatpush2.xpose.msra.mxu0 0.0
  %1184 = vmatprep.subr.mxu0 0.0
  %1185 = vmatpush2.xpose.msra.mxu0 0.0
  %1186 = vmatprep.subr.mxu0 0.0
  %1187 = vmatpush2.xpose.msra.mxu0 0.0
  %1188 = vmatprep.subr.mxu0 0.0
  %1189 = vmatpush2.xpose.msra.mxu0 0.0
  %1190 = vmatprep.subr.mxu0 0.0
  %1191 = vmatpush2.xpose.msra.mxu0 0.0
  %1192 = vmatprep.subr.mxu0 0.0
  %1193 = vmatpush2.xpose.msra.mxu0 0.0
  %1194 = vmatprep.subr.mxu0 0.0
  %1195 = vmatpush2.xpose.msra.mxu0 0.0
  %1196 = vmatprep.subr.mxu0 0.0
  %1197 = vmatpush2.xpose.msra.mxu0 0.0
  %1198 = vmatprep.subr.mxu0 0.0
  %1199 = vmatpush2.xpose.msra.mxu0 0.0
  %1200 = vmatprep.subr.mxu0 0.0
  %1201 = vmatpush2.xpose.msra.mxu0 0.0
  %1202 = vmatprep.subr.mxu0 0.0
  %1203 = vmatpush2.xpose.msra.mxu0 0.0
  %1204 = vmatprep.subr.mxu0 0.0
  %1205 = vmatpush2.xpose.msra.mxu0 0.0
  %1206 = vmatprep.subr.mxu0 0.0
  %1207 = vmatpush2.xpose.msra.mxu0 0.0
  %1208 = vmatprep.subr.mxu0 0.0
  %1209 = vmatpush2.xpose.msra.mxu0 0.0
  %1210 = vmatprep.mubr.f32.mxu0 0.0
  %1211 = vmatmul.mubr.f32.gmra.mxu0 %v268
  %v1212 = vpop.f32.mrf.mxu0
  %v1213 = vadd.f32 0.0, %v1212
  %v1214 = vpop.f32.mrf.mxu0
  %1215 = vdwg.mxu0
  %1216 = vst [vmem:[#allocation2 + $0x8] sm:$0xff] %v1213
  %v1217 = vld [vmem:[%s3 + $0x20] sm:$0xff]
  %v1218 = vld [vmem:[%s3 + $0x28] sm:$0xff]
  %1220 = vset.pattern.permute.xlu0 0
  %1221 = vperm.xlu0 %1220, %v1217
  %v1222 = vpop.permute.xlu0 %1221
  %1225 = vset.pattern.permute.xlu0 0
  %1226 = vperm.xlu0 %1225, %v1218
  %v1227 = vpop.permute.xlu0 %1226
  %v1229 = vmul.f32 %v114, %v1222
  %v1230 = vmul.f32 %v114, %v1227
  %v1231 = vld [vmem:[%s3 + $0x30] sm:$0xff]
  %v1232 = vld [vmem:[%s3 + $0x38] sm:$0xff]
  %1234 = vset.pattern.permute.xlu0 0
  %1235 = vperm.xlu0 %1234, %v1231
  %v1236 = vpop.permute.xlu0 %1235
  %1239 = vset.pattern.permute.xlu0 0
  %1240 = vperm.xlu0 %1239, %v1232
  %v1241 = vpop.permute.xlu0 %1240
  %v1243 = vadd.f32 %v1229, %v1236
  %v1244 = vadd.f32 %v1230, %v1241
  %v1245 = vld [vmem:[%s3 + $0x40] sm:$0xff]
  %v1246 = vld [vmem:[%s3 + $0x48] sm:$0xff]
  %1248 = vset.pattern.permute.xlu0 0
  %1249 = vperm.xlu0 %1248, %v1245
  %v1250 = vpop.permute.xlu0 %1249
  %1253 = vset.pattern.permute.xlu0 0
  %1254 = vperm.xlu0 %1253, %v1246
  %v1255 = vpop.permute.xlu0 %1254
  %v1257 = vmul.f32 %v59, %v1250
  %v1258 = vmul.f32 %v59, %v1255
  %v1259 = vld [vmem:[%s3 + $0x50] sm:$0xff]
  %v1260 = vld [vmem:[%s3 + $0x58] sm:$0xff]
  %1262 = vset.pattern.permute.xlu0 0
  %1263 = vperm.xlu0 %1262, %v1259
  %v1264 = vpop.permute.xlu0 %1263
  %1267 = vset.pattern.permute.xlu0 0
  %1268 = vperm.xlu0 %1267, %v1260
  %v1269 = vpop.permute.xlu0 %1268
  %v1271 = vadd.f32 %v1257, %v1264
  %v1272 = vadd.f32 %v1258, %v1269
  %v1273 = vld [vmem:[%s1 + $0x18] sm:$0xf]
  %v1274 = vld [vmem:[%s1 + $0x1c] sm:$0xf]
  %v1275 = vld [vmem:[#allocation2] sm:$0xff]
  %v1276 = vld [vmem:[#allocation2 + $0x8] sm:$0xff]
  %v1277 = vpack.c.bf16 %v1276, %v1275
  %v1278 = vld [vmem:[%s3 + $0x90] sm:$0xff]
  %v1279 = vld [vmem:[%s3 + $0x98] sm:$0xff]
  %1281 = vset.pattern.permute.xlu0 0
  %1282 = vperm.xlu0 %1281, %v1278
  %v1283 = vpop.permute.xlu0 %1282
  %1286 = vset.pattern.permute.xlu0 0
  %1287 = vperm.xlu0 %1286, %v1279
  %v1288 = vpop.permute.xlu0 %1287
  %v1292 = vunpack.c.l.b16 %v1273
  %v1293 = vunpack.c.l.b16 %v1274
  %v1294 = vpack.c.b16 %v1293, %v1292
  %v1296 = vsel %vm204, %v1294, 0
  %1298 = vmatprep.subr.bf16.mxu0 0
  %1299 = vmatpush1.bf16.msra.mxu0 0
  %1300 = vmatprep.subr.bf16.mxu0 0
  %1301 = vmatpush1.bf16.msra.mxu0 0
  %1302 = vmatprep.subr.bf16.mxu0 0
  %1303 = vmatpush1.bf16.msra.mxu0 0
  %1304 = vmatprep.subr.bf16.mxu0 0
  %1305 = vmatpush1.bf16.msra.mxu0 0
  %1306 = vmatprep.subr.bf16.mxu0 0
  %1307 = vmatpush1.bf16.msra.mxu0 0
  %1308 = vmatprep.subr.bf16.mxu0 0
  %1309 = vmatpush1.bf16.msra.mxu0 0
  %1310 = vmatprep.subr.bf16.mxu0 0
  %1311 = vmatpush1.bf16.msra.mxu0 0
  %1312 = vmatprep.subr.bf16.mxu0 0
  %1313 = vmatpush1.bf16.msra.mxu0 %v1277
  %1314 = vmatprep.subr.bf16.mxu0 0
  %1315 = vmatpush2.bf16.msra.mxu0 0
  %1316 = vmatprep.subr.bf16.mxu0 0
  %1317 = vmatpush2.bf16.msra.mxu0 0
  %1318 = vmatprep.subr.bf16.mxu0 0
  %1319 = vmatpush2.bf16.msra.mxu0 0
  %1320 = vmatprep.subr.bf16.mxu0 0
  %1321 = vmatpush2.bf16.msra.mxu0 0
  %1322 = vmatprep.subr.bf16.mxu0 0
  %1323 = vmatpush2.bf16.msra.mxu0 0
  %1324 = vmatprep.subr.bf16.mxu0 0
  %1325 = vmatpush2.bf16.msra.mxu0 0
  %1326 = vmatprep.subr.bf16.mxu0 0
  %1327 = vmatpush2.bf16.msra.mxu0 0
  %1328 = vmatprep.subr.bf16.mxu0 0
  %1329 = vmatpush2.bf16.msra.mxu0 0
  %1330 = vmatprep.mubr.bf16.mxu0 0
  %1331 = vmatmul.mubr.bf16.gmra.mxu0 %v1296
  %v1332 = vpop.f32.mrf.mxu0
  %v1333 = vadd.f32 %v1283, %v1332
  %v1334 = vpop.f32.mrf.mxu0
  %v1335 = vpop.f32.mrf.mxu0
  %v1336 = vadd.f32 %v1288, %v1335
  %v1337 = vpop.f32.mrf.mxu0
  %1338 = vdwg.mxu0
  %v1339 = vmul.f32 %v1333, %v1243
  %v1340 = vmul.f32 %v1336, %v1244
  %v1341 = vadd.f32 %v21, %v1339
  %v1342 = vadd.f32 %v22, %v1340
  %v1343 = vadd.f32 %v1341, %v1271
  %v1344 = vadd.f32 %v1342, %v1272
  %v1345 = vld [vmem:[%s1 + $0x20] sm:$0xf]
  %v1346 = vld [vmem:[%s1 + $0x24] sm:$0xf]
  %v1347 = vld [vmem:[%s1 + $0x28] sm:$0xf]
  %v1348 = vld [vmem:[%s1 + $0x2c] sm:$0xf]
  %v1349 = vld [vmem:[%s1 + $0x30] sm:$0xf]
  %v1350 = vld [vmem:[%s1 + $0x34] sm:$0xf]
  %v1351 = vld [vmem:[%s1 + $0x38] sm:$0xf]
  %v1352 = vld [vmem:[%s1 + $0x3c] sm:$0xf]
  %v1353 = vpack.c.bf16 %v1344, %v1343
  %v1354 = vld [vmem:[%s3 + $0xa0] sm:$0xff]
  %v1355 = vld [vmem:[%s3 + $0xa8] sm:$0xff]
  %v1356 = vld [vmem:[%s3 + $0xb0] sm:$0xff]
  %v1357 = vld [vmem:[%s3 + $0xb8] sm:$0xff]
  %v1358 = vld [vmem:[%s3 + $0xc0] sm:$0xff]
  %v1359 = vld [vmem:[%s3 + $0xc8] sm:$0xff]
  %v1360 = vld [vmem:[%s3 + $0xd0] sm:$0xff]
  %v1361 = vld [vmem:[%s3 + $0xd8] sm:$0xff]
  %1363 = vset.pattern.permute.xlu0 0
  %1364 = vperm.xlu0 %1363, %v1354
  %v1365 = vpop.permute.xlu0 %1364
  %1368 = vset.pattern.permute.xlu0 0
  %1369 = vperm.xlu0 %1368, %v1355
  %v1370 = vpop.permute.xlu0 %1369
  %1373 = vset.pattern.permute.xlu0 0
  %1374 = vperm.xlu0 %1373, %v1356
  %v1375 = vpop.permute.xlu0 %1374
  %1378 = vset.pattern.permute.xlu0 0
  %1379 = vperm.xlu0 %1378, %v1357
  %v1380 = vpop.permute.xlu0 %1379
  %1383 = vset.pattern.permute.xlu0 0
  %1384 = vperm.xlu0 %1383, %v1358
  %v1385 = vpop.permute.xlu0 %1384
  %1388 = vset.pattern.permute.xlu0 0
  %1389 = vperm.xlu0 %1388, %v1359
  %v1390 = vpop.permute.xlu0 %1389
  %1393 = vset.pattern.permute.xlu0 0
  %1394 = vperm.xlu0 %1393, %v1360
  %v1395 = vpop.permute.xlu0 %1394
  %1398 = vset.pattern.permute.xlu0 0
  %1399 = vperm.xlu0 %1398, %v1361
  %v1400 = vpop.permute.xlu0 %1399
  %v1410 = vunpack.c.l.b16 %v1345
  %v1411 = vunpack.c.l.b16 %v1346
  %v1412 = vunpack.c.l.b16 %v1347
  %v1413 = vunpack.c.l.b16 %v1348
  %v1414 = vunpack.c.l.b16 %v1349
  %v1415 = vunpack.c.l.b16 %v1350
  %v1416 = vunpack.c.l.b16 %v1351
  %v1417 = vunpack.c.l.b16 %v1352
  %v1418 = vpack.c.b16 %v1411, %v1410
  %v1419 = vpack.c.b16 %v1413, %v1412
  %v1420 = vpack.c.b16 %v1415, %v1414
  %v1421 = vpack.c.b16 %v1417, %v1416
  %v1423 = vsel %vm204, %v1418, 0
  %v1426 = vsel %vm204, %v1419, 0
  %v1429 = vsel %vm204, %v1420, 0
  %v1432 = vsel %vm204, %v1421, 0
  %1434 = vmatprep.subr.bf16.mxu0 0
  %1435 = vmatpush1.bf16.msra.mxu0 0
  %1436 = vmatprep.subr.bf16.mxu0 0
  %1437 = vmatpush1.bf16.msra.mxu0 0
  %1438 = vmatprep.subr.bf16.mxu0 0
  %1439 = vmatpush1.bf16.msra.mxu0 0
  %1440 = vmatprep.subr.bf16.mxu0 0
  %1441 = vmatpush1.bf16.msra.mxu0 0
  %1442 = vmatprep.subr.bf16.mxu0 0
  %1443 = vmatpush1.bf16.msra.mxu0 0
  %1444 = vmatprep.subr.bf16.mxu0 0
  %1445 = vmatpush1.bf16.msra.mxu0 0
  %1446 = vmatprep.subr.bf16.mxu0 0
  %1447 = vmatpush1.bf16.msra.mxu0 0
  %1448 = vmatprep.subr.bf16.mxu0 0
  %1449 = vmatpush1.bf16.msra.mxu0 %v1353
  %1450 = vmatprep.subr.bf16.mxu0 0
  %1451 = vmatpush2.bf16.msra.mxu0 0
  %1452 = vmatprep.subr.bf16.mxu0 0
  %1453 = vmatpush2.bf16.msra.mxu0 0
  %1454 = vmatprep.subr.bf16.mxu0 0
  %1455 = vmatpush2.bf16.msra.mxu0 0
  %1456 = vmatprep.subr.bf16.mxu0 0
  %1457 = vmatpush2.bf16.msra.mxu0 0
  %1458 = vmatprep.subr.bf16.mxu0 0
  %1459 = vmatpush2.bf16.msra.mxu0 0
  %1460 = vmatprep.subr.bf16.mxu0 0
  %1461 = vmatpush2.bf16.msra.mxu0 0
  %1462 = vmatprep.subr.bf16.mxu0 0
  %1463 = vmatpush2.bf16.msra.mxu0 0
  %1464 = vmatprep.subr.bf16.mxu0 0
  %1465 = vmatpush2.bf16.msra.mxu0 0
  %1466 = vmatprep.mubr.bf16.mxu0 0
  %1467 = vmatmul.mubr.bf16.gmra.mxu0 %v1423
  %v1468 = vpop.f32.mrf.mxu0
  %v1469 = vadd.f32 %v1365, %v1468
  %v1470 = vpop.f32.mrf.mxu0
  %v1471 = vpop.f32.mrf.mxu0
  %v1472 = vadd.f32 %v1370, %v1471
  %v1473 = vpop.f32.mrf.mxu0
  %1474 = vmatprep.mubr.bf16.mxu0 0
  %1475 = vmatmul.mubr.bf16.gmra.mxu0 %v1426
  %v1476 = vpop.f32.mrf.mxu0
  %v1477 = vadd.f32 %v1375, %v1476
  %v1478 = vpop.f32.mrf.mxu0
  %v1479 = vpop.f32.mrf.mxu0
  %v1480 = vadd.f32 %v1380, %v1479
  %v1481 = vpop.f32.mrf.mxu0
  %1482 = vmatprep.mubr.bf16.mxu0 0
  %1483 = vmatmul.mubr.bf16.gmra.mxu0 %v1429
  %v1484 = vpop.f32.mrf.mxu0
  %v1485 = vadd.f32 %v1385, %v1484
  %v1486 = vpop.f32.mrf.mxu0
  %v1487 = vpop.f32.mrf.mxu0
  %v1488 = vadd.f32 %v1390, %v1487
  %v1489 = vpop.f32.mrf.mxu0
  %1490 = vmatprep.mubr.bf16.mxu0 0
  %1491 = vmatmul.mubr.bf16.gmra.mxu0 %v1432
  %v1492 = vpop.f32.mrf.mxu0
  %v1493 = vadd.f32 %v1395, %v1492
  %v1494 = vpop.f32.mrf.mxu0
  %v1495 = vpop.f32.mrf.mxu0
  %v1496 = vadd.f32 %v1400, %v1495
  %v1497 = vpop.f32.mrf.mxu0
  %1498 = vdwg.mxu0
  %v1499 = vmax.f32 %v1469, 0.0
  %v1500 = vmax.f32 %v1472, 0.0
  %v1501 = vmax.f32 %v1477, 0.0
  %v1502 = vmax.f32 %v1480, 0.0
  %v1503 = vmax.f32 %v1485, 0.0
  %v1504 = vmax.f32 %v1488, 0.0
  %v1505 = vmax.f32 %v1493, 0.0
  %v1506 = vmax.f32 %v1496, 0.0
  %v1507 = vld [vmem:[%s2] sm:$0xf]
  %v1508 = vld [vmem:[%s2 + $0x4] sm:$0xf]
  %v1509 = vpack.c.bf16 %v1500, %v1499
  %v1510 = vpack.c.bf16 %v1502, %v1501
  %v1511 = vpack.c.bf16 %v1504, %v1503
  %v1512 = vpack.c.bf16 %v1506, %v1505
  %v1513 = vld [vmem:[%s3 + $0xe0] sm:$0xff]
  %v1514 = vld [vmem:[%s3 + $0xe8] sm:$0xff]
  %1516 = vset.pattern.permute.xlu0 0
  %1517 = vperm.xlu0 %1516, %v1513
  %v1518 = vpop.permute.xlu0 %1517
  %1521 = vset.pattern.permute.xlu0 0
  %1522 = vperm.xlu0 %1521, %v1514
  %v1523 = vpop.permute.xlu0 %1522
  %v1527 = vunpack.c.l.b16 %v1507
  %v1528 = vunpack.c.l.b16 %v1508
  %v1529 = vpack.c.b16 %v1528, %v1527
  %vm1530 = vcmask 523264
  %v1532 = vsel %vm1530, %v1529, 0
  %1534 = vmatprep.subr.bf16.mxu0 0
  %1535 = vmatpush1.bf16.msra.mxu0 0
  %1536 = vmatprep.subr.bf16.mxu0 0
  %1537 = vmatpush1.bf16.msra.mxu0 0
  %1538 = vmatprep.subr.bf16.mxu0 0
  %1539 = vmatpush1.bf16.msra.mxu0 0
  %1540 = vmatprep.subr.bf16.mxu0 0
  %1541 = vmatpush1.bf16.msra.mxu0 0
  %1542 = vmatprep.subr.bf16.mxu0 0
  %1543 = vmatpush1.bf16.msra.mxu0 %v1512
  %1544 = vmatprep.subr.bf16.mxu0 0
  %1545 = vmatpush1.bf16.msra.mxu0 %v1511
  %1546 = vmatprep.subr.bf16.mxu0 0
  %1547 = vmatpush1.bf16.msra.mxu0 %v1510
  %1548 = vmatprep.subr.bf16.mxu0 0
  %1549 = vmatpush1.bf16.msra.mxu0 %v1509
  %1550 = vmatprep.subr.bf16.mxu0 0
  %1551 = vmatpush2.bf16.msra.mxu0 0
  %1552 = vmatprep.subr.bf16.mxu0 0
  %1553 = vmatpush2.bf16.msra.mxu0 0
  %1554 = vmatprep.subr.bf16.mxu0 0
  %1555 = vmatpush2.bf16.msra.mxu0 0
  %1556 = vmatprep.subr.bf16.mxu0 0
  %1557 = vmatpush2.bf16.msra.mxu0 0
  %1558 = vmatprep.subr.bf16.mxu0 0
  %1559 = vmatpush2.bf16.msra.mxu0 0
  %1560 = vmatprep.subr.bf16.mxu0 0
  %1561 = vmatpush2.bf16.msra.mxu0 0
  %1562 = vmatprep.subr.bf16.mxu0 0
  %1563 = vmatpush2.bf16.msra.mxu0 0
  %1564 = vmatprep.subr.bf16.mxu0 0
  %1565 = vmatpush2.bf16.msra.mxu0 0
  %1566 = vmatprep.mubr.bf16.mxu0 0
  %1567 = vmatmul.mubr.bf16.gmra.mxu0 %v1532
  %v1568 = vpop.f32.mrf.mxu0
  %v1569 = vadd.f32 %v1518, %v1568
  %v1570 = vpop.f32.mrf.mxu0
  %v1571 = vpop.f32.mrf.mxu0
  %v1572 = vadd.f32 %v1523, %v1571
  %v1573 = vpop.f32.mrf.mxu0
  %1574 = vdwg.mxu0
  %v1575 = vadd.f32 %v1343, %v1569
  %v1576 = vadd.f32 %v1344, %v1572
  %1577 = vst [vmem:[%s5] sm:$0xff] %v1575
  %1578 = vst [vmem:[%s5 + $0x8] sm:$0xff] %v1576
  // Predicated region
  $region22: #{transformer_block.1} parent=0 // pred_check
    _
  $region23: #{transformer_block.1} parent=0 // pred_check_branch
    %1580 = sbr.rel (0) target = $region25
  $region24: #{transformer_block.1} parent=0 // pred_region
    _
  $region25: #{transformer_block.1} parent=0 // pred_fallthru
    _
  // Predicated region
  $region26: #{transformer_block.1} parent=0 // pred_check
    _
  $region27: #{transformer_block.1} parent=0 // pred_check_branch
    %1582 = sbr.rel (0) target = $region29
  $region28: #{transformer_block.1} parent=0 // pred_region
    _
  $region29: #{transformer_block.1} parent=0 // pred_fallthru
    _

</llo_original>
